<compile_context>
chip_gen: v7x
topology: tpu7x:2x2x1
jax: 0.10.0
libtpu: 0.0.40
codegen_flags: <defaults>
</compile_context>

<pallas_src>
import functools

import numpy as np
import jax
import jax.numpy as jnp
from jax import lax
from jax.experimental import pallas as pl
from jax.experimental.pallas import tpu as pltpu


# ------------------------------ Pallas kernel ------------------------------ #

def _fused_mha_kernel(q_ref, k_ref, v_ref,
                      wq_ref, bq_ref, wk_ref, bk_ref, wv_ref, bv_ref,
                      wo_ref, bo_ref, o_ref, ctx_ref, *, num_heads, scale):
    """One batch element per grid step: full-width QKV proj + per-head attention
    + merged output projection, fully fused in VMEM."""
    xq = q_ref[0]                      # (Lq, D) f32
    xk = k_ref[0]                      # (Lk, D) f32
    xv = v_ref[0]                      # (Lk, D) f32
    Lq, D = xq.shape
    Dh = D // num_heads

    # --- full-width projections: one (L, D) @ (D, D) bf16 MXU matmul each ----
    # scale folded into the projected q slab (applied after bias, so
    # scores == ((xq@Wq + bq) @ (xk@Wk + bk)^T) / sqrt(Dh) exactly).
    q_full = ((jnp.dot(xq.astype(jnp.bfloat16), wq_ref[...],
                       preferred_element_type=jnp.float32)
               + bq_ref[...]) * scale).astype(jnp.bfloat16)        # (Lq, D)
    k_full = (jnp.dot(xk.astype(jnp.bfloat16), wk_ref[...],
                      preferred_element_type=jnp.float32)
              + bk_ref[...]).astype(jnp.bfloat16)                  # (Lk, D)
    v_full = (jnp.dot(xv.astype(jnp.bfloat16), wv_ref[...],
                      preferred_element_type=jnp.float32)
              + bv_ref[...]).astype(jnp.bfloat16)                  # (Lk, D)

    # --- per-head attention (statically unrolled; slices of the projected slabs)
    for h in range(num_heads):
        lo, hi = h * Dh, (h + 1) * Dh
        qh = q_full[:, lo:hi]                                      # (Lq, Dh) bf16
        kh = k_full[:, lo:hi]                                      # (Lk, Dh) bf16
        vh = v_full[:, lo:hi]                                      # (Lk, Dh) bf16

        # scores: contract the head dim of both operands (no explicit kh.T)
        s = lax.dot_general(qh, kh,
                            dimension_numbers=(((1,), (1,)), ((), ())),
                            preferred_element_type=jnp.float32)    # (Lq, Lk) f32

        # softmax in f32 (v5e VPU/EUP have no bf16)
        m = jnp.max(s, axis=-1, keepdims=True)
        e = jnp.exp(s - m)
        p = e * pl.reciprocal(jnp.sum(e, axis=-1, keepdims=True), approx=True)

        # per-head context -> static lane window of the (Lq, D) ctx slab
        ctx_ref[:, lo:hi] = jnp.dot(p.astype(jnp.bfloat16), vh,
                                    preferred_element_type=jnp.float32)

    # --- ONE merged output projection over the lane-dense ctx slab ------------
    out = jnp.dot(ctx_ref[...].astype(jnp.bfloat16), wo_ref[...],
                  preferred_element_type=jnp.float32) + bo_ref[...]
    o_ref[0] = out.astype(o_ref.dtype)            # one lane-dense (Lq, D) store


# ------------------------------ host wrapper ------------------------------- #

def multi_head_attention(params, query, key, value, *, num_heads=8):
    """query: (B, Lq, D); key/value: (B, Lk, D).

    Weight contract: params['w*'] are (in, out) = torch_linear.weight.T,
    params['b*'] are (1, out). Eval mode (dropout = identity), mask = None.
    """
    B, Lq, D = query.shape
    Lk = key.shape[1]
    assert value.shape == key.shape
    assert D % num_heads == 0
    for name in ('wq', 'wk', 'wv', 'wo'):
        assert params[name].shape == (D, D), f"{name} must be (in, out) = torch W.T"
    Dh = D // num_heads
    scale = 1.0 / (Dh ** 0.5)

    # bf16 matmul operands (half the weight DMA/VMEM); biases stay f32.
    wq = params['wq'].astype(jnp.bfloat16)
    wk = params['wk'].astype(jnp.bfloat16)
    wv = params['wv'].astype(jnp.bfloat16)
    wo = params['wo'].astype(jnp.bfloat16)

    const = lambda b: (0, 0)            # weights/biases: same block every step -> VMEM-resident
    kernel = functools.partial(_fused_mha_kernel, num_heads=num_heads, scale=scale)

    return pl.pallas_call(
        kernel,
        out_shape=jax.ShapeDtypeStruct((B, Lq, D), query.dtype),
        grid=(B,),
        in_specs=[
            pl.BlockSpec((1, Lq, D), lambda b: (b, 0, 0)),   # query
            pl.BlockSpec((1, Lk, D), lambda b: (b, 0, 0)),   # key
            pl.BlockSpec((1, Lk, D), lambda b: (b, 0, 0)),   # value
            pl.BlockSpec((D, D), const), pl.BlockSpec((1, D), const),   # Wq, bq
            pl.BlockSpec((D, D), const), pl.BlockSpec((1, D), const),   # Wk, bk
            pl.BlockSpec((D, D), const), pl.BlockSpec((1, D), const),   # Wv, bv
            pl.BlockSpec((D, D), const), pl.BlockSpec((1, D), const),   # Wo, bo
        ],
        out_specs=pl.BlockSpec((1, Lq, D), lambda b: (b, 0, 0)),
        scratch_shapes=[pltpu.VMEM((Lq, D), jnp.float32)],   # per-step ctx slab
        compiler_params=pltpu.CompilerParams(
            dimension_semantics=("parallel",)),   # shards batch over v7x's 2 TCs
    )(query, key, value,
      wq, params['bq'], wk, params['bk'], wv, params['bv'], wo, params['bo'])


# ----------------------------- pure-JAX reference --------------------------- #

def mha_reference(params, query, key, value, *, num_heads=8):
    B, Lq, D = query.shape
    Lk = key.shape[1]
    Dh = D // num_heads
    q = (query @ params['wq'] + params['bq']).reshape(B, Lq, num_heads, Dh).transpose(0, 2, 1, 3)
    k = (key   @ params['wk'] + params['bk']).reshape(B, Lk, num_heads, Dh).transpose(0, 2, 1, 3)
    v = (value @ params['wv'] + params['bv']).reshape(B, Lk, num_heads, Dh).transpose(0, 2, 1, 3)
    s = jnp.einsum('bhqd,bhkd->bhqk', q, k) / (Dh ** 0.5)
    p = jax.nn.softmax(s, axis=-1)
    ctx = jnp.einsum('bhqk,bhkd->bhqd', p, v).transpose(0, 2, 1, 3).reshape(B, Lq, D)
    return ctx @ params['wo'] + params['bo']


# --------------------------------- params ----------------------------------- #

def init_mha_params(rng, D):
    ks = jax.random.split(rng, 8)
    def w(k): return jax.random.normal(k, (D, D), jnp.float32) * (1.0 / np.sqrt(D))
    def b(k): return jax.random.normal(k, (1, D), jnp.float32) * 0.02
    return {'wq': w(ks[0]), 'bq': b(ks[1]),
            'wk': w(ks[2]), 'bk': b(ks[3]),
            'wv': w(ks[4]), 'bv': b(ks[5]),
            'wo': w(ks[6]), 'bo': b(ks[7])}


# ----------------------------------- main ------------------------------------ #

if __name__ == "__main__":
    B, Lq, Lk, D, H = 2, 16, 8, 128, 8     # small shapes, D multiple of H, lane-dense D=128

    root = jax.random.PRNGKey(0)
    kp, kq, kk, kv = jax.random.split(root, 4)
    params = init_mha_params(kp, D)

    query = jax.random.normal(kq, (B, Lq, D), jnp.float32)
    key_in = jax.random.normal(kk, (B, Lk, D), jnp.float32)
    value_in = jax.random.normal(kv, (B, Lk, D), jnp.float32)

    fwd = jax.jit(functools.partial(multi_head_attention, num_heads=H))
    out = fwd(params, query, key_in, value_in)
    out = jax.block_until_ready(out)

    ref = mha_reference(params, query, key_in, value_in, num_heads=H)

    assert out.shape == (B, Lq, D)
    assert bool(jnp.all(jnp.isfinite(out)))
    # bf16 MXU operands (f32 accumulate) -> bf16-class tolerance vs the f32 reference.
    max_diff = float(jnp.max(jnp.abs(out - ref)))
    assert bool(jnp.allclose(out, ref, atol=1e-1, rtol=1e-1)), \
        f"max abs diff = {max_diff}"
    print("KERNEL_OK")
</pallas_src>

<mosaic_0001>
module attributes {stable_mosaic.version = 11 : i64} {
  func.func @_fused_mha_kernel(%arg0: i32, %arg1: memref<1x16x128xf32, #tpu.memory_space<vmem>>, %arg2: memref<1x8x128xf32, #tpu.memory_space<vmem>>, %arg3: memref<1x8x128xf32, #tpu.memory_space<vmem>>, %arg4: memref<128x128xbf16, #tpu.memory_space<vmem>>, %arg5: memref<1x128xf32, #tpu.memory_space<vmem>>, %arg6: memref<128x128xbf16, #tpu.memory_space<vmem>>, %arg7: memref<1x128xf32, #tpu.memory_space<vmem>>, %arg8: memref<128x128xbf16, #tpu.memory_space<vmem>>, %arg9: memref<1x128xf32, #tpu.memory_space<vmem>>, %arg10: memref<128x128xbf16, #tpu.memory_space<vmem>>, %arg11: memref<1x128xf32, #tpu.memory_space<vmem>>, %arg12: memref<1x16x128xf32, #tpu.memory_space<vmem>>, %arg13: memref<16x128xf32, #tpu.memory_space<vmem>>) attributes {dimension_semantics = [#tpu.dimension_semantics<parallel>], iteration_bounds = array<i64: 2>, scalar_prefetch = 0 : i64, scratch_operands = 1 : i64, tpu.core_type = #tpu.core_type<tc>, window_params = [{transform_indices = @transform_0, window_bounds = array<i64: 1, 16, 128>}, {transform_indices = @transform_1, window_bounds = array<i64: 1, 8, 128>}, {transform_indices = @transform_2, window_bounds = array<i64: 1, 8, 128>}, {pipeline_mode = #tpu.pipeline_mode<synchronous>, transform_indices = @transform_3, window_bounds = array<i64: 128, 128>}, {pipeline_mode = #tpu.pipeline_mode<synchronous>, transform_indices = @transform_4, window_bounds = array<i64: 1, 128>}, {pipeline_mode = #tpu.pipeline_mode<synchronous>, transform_indices = @transform_5, window_bounds = array<i64: 128, 128>}, {pipeline_mode = #tpu.pipeline_mode<synchronous>, transform_indices = @transform_6, window_bounds = array<i64: 1, 128>}, {pipeline_mode = #tpu.pipeline_mode<synchronous>, transform_indices = @transform_7, window_bounds = array<i64: 128, 128>}, {pipeline_mode = #tpu.pipeline_mode<synchronous>, transform_indices = @transform_8, window_bounds = array<i64: 1, 128>}, {pipeline_mode = #tpu.pipeline_mode<synchronous>, transform_indices = @transform_9, window_bounds = array<i64: 128, 128>}, {pipeline_mode = #tpu.pipeline_mode<synchronous>, transform_indices = @transform_10, window_bounds = array<i64: 1, 128>}, {transform_indices = @transform_11, window_bounds = array<i64: 1, 16, 128>}]} {
    %c0 = arith.constant 0 : index
    %c0_0 = arith.constant 0 : index
    %c0_1 = arith.constant 0 : index
    %0 = vector.load %arg1[%c0, %c0_0, %c0_1] : memref<1x16x128xf32, #tpu.memory_space<vmem>>, vector<1x16x128xf32>
    %1 = vector.shape_cast %0 : vector<1x16x128xf32> to vector<16x128xf32>
    %c0_2 = arith.constant 0 : index
    %c0_3 = arith.constant 0 : index
    %c0_4 = arith.constant 0 : index
    %2 = vector.load %arg2[%c0_2, %c0_3, %c0_4] : memref<1x8x128xf32, #tpu.memory_space<vmem>>, vector<1x8x128xf32>
    %3 = vector.shape_cast %2 : vector<1x8x128xf32> to vector<8x128xf32>
    %c0_5 = arith.constant 0 : index
    %c0_6 = arith.constant 0 : index
    %c0_7 = arith.constant 0 : index
    %4 = vector.load %arg3[%c0_5, %c0_6, %c0_7] : memref<1x8x128xf32, #tpu.memory_space<vmem>>, vector<1x8x128xf32>
    %5 = vector.shape_cast %4 : vector<1x8x128xf32> to vector<8x128xf32>
    %6 = arith.truncf %1 : vector<16x128xf32> to vector<16x128xbf16>
    %c0_8 = arith.constant 0 : index
    %c0_9 = arith.constant 0 : index
    %7 = vector.load %arg4[%c0_8, %c0_9] : memref<128x128xbf16, #tpu.memory_space<vmem>>, vector<128x128xbf16>
    %cst = arith.constant dense<0.000000e+00> : vector<16x128xf32>
    %8 = tpu.matmul %6, %7, %cst {dimension_numbers = #tpu.dot_dimension_numbers<[1], [0], [0], [1], [0, 0, 1, 1], [], []>} : vector<16x128xbf16>, vector<128x128xbf16>, vector<16x128xf32> -> vector<16x128xf32>
    %c0_10 = arith.constant 0 : index
    %c0_11 = arith.constant 0 : index
    %9 = vector.load %arg5[%c0_10, %c0_11] : memref<1x128xf32, #tpu.memory_space<vmem>>, vector<1x128xf32>
    %10 = vector.broadcast %9 : vector<1x128xf32> to vector<16x128xf32>
    %11 = arith.addf %8, %10 : vector<16x128xf32>
    %cst_12 = arith.constant 2.500000e-01 : f32
    %12 = vector.broadcast %cst_12 : f32 to vector<16x128xf32>
    %13 = arith.mulf %11, %12 : vector<16x128xf32>
    %14 = arith.truncf %13 : vector<16x128xf32> to vector<16x128xbf16>
    %15 = arith.truncf %3 : vector<8x128xf32> to vector<8x128xbf16>
    %c0_13 = arith.constant 0 : index
    %c0_14 = arith.constant 0 : index
    %16 = vector.load %arg6[%c0_13, %c0_14] : memref<128x128xbf16, #tpu.memory_space<vmem>>, vector<128x128xbf16>
    %cst_15 = arith.constant dense<0.000000e+00> : vector<8x128xf32>
    %17 = tpu.matmul %15, %16, %cst_15 {dimension_numbers = #tpu.dot_dimension_numbers<[1], [0], [0], [1], [0, 0, 1, 1], [], []>} : vector<8x128xbf16>, vector<128x128xbf16>, vector<8x128xf32> -> vector<8x128xf32>
    %c0_16 = arith.constant 0 : index
    %c0_17 = arith.constant 0 : index
    %18 = vector.load %arg7[%c0_16, %c0_17] : memref<1x128xf32, #tpu.memory_space<vmem>>, vector<1x128xf32>
    %19 = vector.broadcast %18 : vector<1x128xf32> to vector<8x128xf32>
    %20 = arith.addf %17, %19 : vector<8x128xf32>
    %21 = arith.truncf %20 : vector<8x128xf32> to vector<8x128xbf16>
    %22 = arith.truncf %5 : vector<8x128xf32> to vector<8x128xbf16>
    %c0_18 = arith.constant 0 : index
    %c0_19 = arith.constant 0 : index
    %23 = vector.load %arg8[%c0_18, %c0_19] : memref<128x128xbf16, #tpu.memory_space<vmem>>, vector<128x128xbf16>
    %cst_20 = arith.constant dense<0.000000e+00> : vector<8x128xf32>
    %24 = tpu.matmul %22, %23, %cst_20 {dimension_numbers = #tpu.dot_dimension_numbers<[1], [0], [0], [1], [0, 0, 1, 1], [], []>} : vector<8x128xbf16>, vector<128x128xbf16>, vector<8x128xf32> -> vector<8x128xf32>
    %c0_21 = arith.constant 0 : index
    %c0_22 = arith.constant 0 : index
    %25 = vector.load %arg9[%c0_21, %c0_22] : memref<1x128xf32, #tpu.memory_space<vmem>>, vector<1x128xf32>
    %26 = vector.broadcast %25 : vector<1x128xf32> to vector<8x128xf32>
    %27 = arith.addf %24, %26 : vector<8x128xf32>
    %28 = arith.truncf %27 : vector<8x128xf32> to vector<8x128xbf16>
    %29 = vector.extract_strided_slice %14 {offsets = [0, 0], sizes = [16, 16], strides = [1, 1]} : vector<16x128xbf16> to vector<16x16xbf16>
    %30 = vector.extract_strided_slice %21 {offsets = [0, 0], sizes = [8, 16], strides = [1, 1]} : vector<8x128xbf16> to vector<8x16xbf16>
    %31 = vector.extract_strided_slice %28 {offsets = [0, 0], sizes = [8, 16], strides = [1, 1]} : vector<8x128xbf16> to vector<8x16xbf16>
    %cst_23 = arith.constant dense<0.000000e+00> : vector<16x8xf32>
    %32 = tpu.matmul %29, %30, %cst_23 {dimension_numbers = #tpu.dot_dimension_numbers<[1], [1], [0], [0], [0, 0, 1, 0], [], []>} : vector<16x16xbf16>, vector<8x16xbf16>, vector<16x8xf32> -> vector<16x8xf32>
    %cst_24 = arith.constant dense<0xFF800000> : vector<16xf32>
    %33 = vector.multi_reduction <maximumf>, %32, %cst_24 [1] : vector<16x8xf32> to vector<16xf32>
    %34 = vector.shape_cast %33 : vector<16xf32> to vector<16x1xf32>
    %35 = vector.broadcast %34 : vector<16x1xf32> to vector<16x8xf32>
    %36 = arith.subf %32, %35 : vector<16x8xf32>
    %37 = math.exp %36 : vector<16x8xf32>
    %cst_25 = arith.constant dense<0.000000e+00> : vector<16xf32>
    %38 = vector.multi_reduction <add>, %37, %cst_25 [1] : vector<16x8xf32> to vector<16xf32>
    %39 = vector.shape_cast %38 : vector<16xf32> to vector<16x1xf32>
    %40 = tpu.reciprocal %39 {approx = true} : vector<16x1xf32> -> vector<16x1xf32>
    %41 = vector.broadcast %40 : vector<16x1xf32> to vector<16x8xf32>
    %42 = arith.mulf %37, %41 : vector<16x8xf32>
    %43 = arith.truncf %42 : vector<16x8xf32> to vector<16x8xbf16>
    %cst_26 = arith.constant dense<0.000000e+00> : vector<16x16xf32>
    %44 = tpu.matmul %43, %31, %cst_26 {dimension_numbers = #tpu.dot_dimension_numbers<[1], [0], [0], [1], [0, 0, 1, 1], [], []>} : vector<16x8xbf16>, vector<8x16xbf16>, vector<16x16xf32> -> vector<16x16xf32>
    %c0_27 = arith.constant 0 : index
    %c0_28 = arith.constant 0 : index
    %45 = vector.load %arg13[%c0_27, %c0_28] : memref<16x128xf32, #tpu.memory_space<vmem>>, vector<16x16xf32>
    tpu.vector_store %arg13[%c0_27, %c0_28], %44 {strides = array<i32>} : memref<16x128xf32, #tpu.memory_space<vmem>>, vector<16x16xf32>,
    %46 = vector.extract_strided_slice %14 {offsets = [0, 16], sizes = [16, 16], strides = [1, 1]} : vector<16x128xbf16> to vector<16x16xbf16>
    %47 = vector.extract_strided_slice %21 {offsets = [0, 16], sizes = [8, 16], strides = [1, 1]} : vector<8x128xbf16> to vector<8x16xbf16>
    %48 = vector.extract_strided_slice %28 {offsets = [0, 16], sizes = [8, 16], strides = [1, 1]} : vector<8x128xbf16> to vector<8x16xbf16>
    %cst_29 = arith.constant dense<0.000000e+00> : vector<16x8xf32>
    %49 = tpu.matmul %46, %47, %cst_29 {dimension_numbers = #tpu.dot_dimension_numbers<[1], [1], [0], [0], [0, 0, 1, 0], [], []>} : vector<16x16xbf16>, vector<8x16xbf16>, vector<16x8xf32> -> vector<16x8xf32>
    %cst_30 = arith.constant dense<0xFF800000> : vector<16xf32>
    %50 = vector.multi_reduction <maximumf>, %49, %cst_30 [1] : vector<16x8xf32> to vector<16xf32>
    %51 = vector.shape_cast %50 : vector<16xf32> to vector<16x1xf32>
    %52 = vector.broadcast %51 : vector<16x1xf32> to vector<16x8xf32>
    %53 = arith.subf %49, %52 : vector<16x8xf32>
    %54 = math.exp %53 : vector<16x8xf32>
    %cst_31 = arith.constant dense<0.000000e+00> : vector<16xf32>
    %55 = vector.multi_reduction <add>, %54, %cst_31 [1] : vector<16x8xf32> to vector<16xf32>
    %56 = vector.shape_cast %55 : vector<16xf32> to vector<16x1xf32>
    %57 = tpu.reciprocal %56 {approx = true} : vector<16x1xf32> -> vector<16x1xf32>
    %58 = vector.broadcast %57 : vector<16x1xf32> to vector<16x8xf32>
    %59 = arith.mulf %54, %58 : vector<16x8xf32>
    %60 = arith.truncf %59 : vector<16x8xf32> to vector<16x8xbf16>
    %cst_32 = arith.constant dense<0.000000e+00> : vector<16x16xf32>
    %61 = tpu.matmul %60, %48, %cst_32 {dimension_numbers = #tpu.dot_dimension_numbers<[1], [0], [0], [1], [0, 0, 1, 1], [], []>} : vector<16x8xbf16>, vector<8x16xbf16>, vector<16x16xf32> -> vector<16x16xf32>
    %c0_33 = arith.constant 0 : index
    %c16 = arith.constant 16 : index
    %62 = vector.load %arg13[%c0_33, %c16] : memref<16x128xf32, #tpu.memory_space<vmem>>, vector<16x16xf32>
    tpu.vector_store %arg13[%c0_33, %c16], %61 {strides = array<i32>} : memref<16x128xf32, #tpu.memory_space<vmem>>, vector<16x16xf32>,
    %63 = vector.extract_strided_slice %14 {offsets = [0, 32], sizes = [16, 16], strides = [1, 1]} : vector<16x128xbf16> to vector<16x16xbf16>
    %64 = vector.extract_strided_slice %21 {offsets = [0, 32], sizes = [8, 16], strides = [1, 1]} : vector<8x128xbf16> to vector<8x16xbf16>
    %65 = vector.extract_strided_slice %28 {offsets = [0, 32], sizes = [8, 16], strides = [1, 1]} : vector<8x128xbf16> to vector<8x16xbf16>
    %cst_34 = arith.constant dense<0.000000e+00> : vector<16x8xf32>
    %66 = tpu.matmul %63, %64, %cst_34 {dimension_numbers = #tpu.dot_dimension_numbers<[1], [1], [0], [0], [0, 0, 1, 0], [], []>} : vector<16x16xbf16>, vector<8x16xbf16>, vector<16x8xf32> -> vector<16x8xf32>
    %cst_35 = arith.constant dense<0xFF800000> : vector<16xf32>
    %67 = vector.multi_reduction <maximumf>, %66, %cst_35 [1] : vector<16x8xf32> to vector<16xf32>
    %68 = vector.shape_cast %67 : vector<16xf32> to vector<16x1xf32>
    %69 = vector.broadcast %68 : vector<16x1xf32> to vector<16x8xf32>
    %70 = arith.subf %66, %69 : vector<16x8xf32>
    %71 = math.exp %70 : vector<16x8xf32>
    %cst_36 = arith.constant dense<0.000000e+00> : vector<16xf32>
    %72 = vector.multi_reduction <add>, %71, %cst_36 [1] : vector<16x8xf32> to vector<16xf32>
    %73 = vector.shape_cast %72 : vector<16xf32> to vector<16x1xf32>
    %74 = tpu.reciprocal %73 {approx = true} : vector<16x1xf32> -> vector<16x1xf32>
    %75 = vector.broadcast %74 : vector<16x1xf32> to vector<16x8xf32>
    %76 = arith.mulf %71, %75 : vector<16x8xf32>
    %77 = arith.truncf %76 : vector<16x8xf32> to vector<16x8xbf16>
    %cst_37 = arith.constant dense<0.000000e+00> : vector<16x16xf32>
    %78 = tpu.matmul %77, %65, %cst_37 {dimension_numbers = #tpu.dot_dimension_numbers<[1], [0], [0], [1], [0, 0, 1, 1], [], []>} : vector<16x8xbf16>, vector<8x16xbf16>, vector<16x16xf32> -> vector<16x16xf32>
    %c0_38 = arith.constant 0 : index
    %c32 = arith.constant 32 : index
    %79 = vector.load %arg13[%c0_38, %c32] : memref<16x128xf32, #tpu.memory_space<vmem>>, vector<16x16xf32>
    tpu.vector_store %arg13[%c0_38, %c32], %78 {strides = array<i32>} : memref<16x128xf32, #tpu.memory_space<vmem>>, vector<16x16xf32>,
    %80 = vector.extract_strided_slice %14 {offsets = [0, 48], sizes = [16, 16], strides = [1, 1]} : vector<16x128xbf16> to vector<16x16xbf16>
    %81 = vector.extract_strided_slice %21 {offsets = [0, 48], sizes = [8, 16], strides = [1, 1]} : vector<8x128xbf16> to vector<8x16xbf16>
    %82 = vector.extract_strided_slice %28 {offsets = [0, 48], sizes = [8, 16], strides = [1, 1]} : vector<8x128xbf16> to vector<8x16xbf16>
    %cst_39 = arith.constant dense<0.000000e+00> : vector<16x8xf32>
    %83 = tpu.matmul %80, %81, %cst_39 {dimension_numbers = #tpu.dot_dimension_numbers<[1], [1], [0], [0], [0, 0, 1, 0], [], []>} : vector<16x16xbf16>, vector<8x16xbf16>, vector<16x8xf32> -> vector<16x8xf32>
    %cst_40 = arith.constant dense<0xFF800000> : vector<16xf32>
    %84 = vector.multi_reduction <maximumf>, %83, %cst_40 [1] : vector<16x8xf32> to vector<16xf32>
    %85 = vector.shape_cast %84 : vector<16xf32> to vector<16x1xf32>
    %86 = vector.broadcast %85 : vector<16x1xf32> to vector<16x8xf32>
    %87 = arith.subf %83, %86 : vector<16x8xf32>
    %88 = math.exp %87 : vector<16x8xf32>
    %cst_41 = arith.constant dense<0.000000e+00> : vector<16xf32>
    %89 = vector.multi_reduction <add>, %88, %cst_41 [1] : vector<16x8xf32> to vector<16xf32>
    %90 = vector.shape_cast %89 : vector<16xf32> to vector<16x1xf32>
    %91 = tpu.reciprocal %90 {approx = true} : vector<16x1xf32> -> vector<16x1xf32>
    %92 = vector.broadcast %91 : vector<16x1xf32> to vector<16x8xf32>
    %93 = arith.mulf %88, %92 : vector<16x8xf32>
    %94 = arith.truncf %93 : vector<16x8xf32> to vector<16x8xbf16>
    %cst_42 = arith.constant dense<0.000000e+00> : vector<16x16xf32>
    %95 = tpu.matmul %94, %82, %cst_42 {dimension_numbers = #tpu.dot_dimension_numbers<[1], [0], [0], [1], [0, 0, 1, 1], [], []>} : vector<16x8xbf16>, vector<8x16xbf16>, vector<16x16xf32> -> vector<16x16xf32>
    %c0_43 = arith.constant 0 : index
    %c48 = arith.constant 48 : index
    %96 = vector.load %arg13[%c0_43, %c48] : memref<16x128xf32, #tpu.memory_space<vmem>>, vector<16x16xf32>
    tpu.vector_store %arg13[%c0_43, %c48], %95 {strides = array<i32>} : memref<16x128xf32, #tpu.memory_space<vmem>>, vector<16x16xf32>,
    %97 = vector.extract_strided_slice %14 {offsets = [0, 64], sizes = [16, 16], strides = [1, 1]} : vector<16x128xbf16> to vector<16x16xbf16>
    %98 = vector.extract_strided_slice %21 {offsets = [0, 64], sizes = [8, 16], strides = [1, 1]} : vector<8x128xbf16> to vector<8x16xbf16>
    %99 = vector.extract_strided_slice %28 {offsets = [0, 64], sizes = [8, 16], strides = [1, 1]} : vector<8x128xbf16> to vector<8x16xbf16>
    %cst_44 = arith.constant dense<0.000000e+00> : vector<16x8xf32>
    %100 = tpu.matmul %97, %98, %cst_44 {dimension_numbers = #tpu.dot_dimension_numbers<[1], [1], [0], [0], [0, 0, 1, 0], [], []>} : vector<16x16xbf16>, vector<8x16xbf16>, vector<16x8xf32> -> vector<16x8xf32>
    %cst_45 = arith.constant dense<0xFF800000> : vector<16xf32>
    %101 = vector.multi_reduction <maximumf>, %100, %cst_45 [1] : vector<16x8xf32> to vector<16xf32>
    %102 = vector.shape_cast %101 : vector<16xf32> to vector<16x1xf32>
    %103 = vector.broadcast %102 : vector<16x1xf32> to vector<16x8xf32>
    %104 = arith.subf %100, %103 : vector<16x8xf32>
    %105 = math.exp %104 : vector<16x8xf32>
    %cst_46 = arith.constant dense<0.000000e+00> : vector<16xf32>
    %106 = vector.multi_reduction <add>, %105, %cst_46 [1] : vector<16x8xf32> to vector<16xf32>
    %107 = vector.shape_cast %106 : vector<16xf32> to vector<16x1xf32>
    %108 = tpu.reciprocal %107 {approx = true} : vector<16x1xf32> -> vector<16x1xf32>
    %109 = vector.broadcast %108 : vector<16x1xf32> to vector<16x8xf32>
    %110 = arith.mulf %105, %109 : vector<16x8xf32>
    %111 = arith.truncf %110 : vector<16x8xf32> to vector<16x8xbf16>
    %cst_47 = arith.constant dense<0.000000e+00> : vector<16x16xf32>
    %112 = tpu.matmul %111, %99, %cst_47 {dimension_numbers = #tpu.dot_dimension_numbers<[1], [0], [0], [1], [0, 0, 1, 1], [], []>} : vector<16x8xbf16>, vector<8x16xbf16>, vector<16x16xf32> -> vector<16x16xf32>
    %c0_48 = arith.constant 0 : index
    %c64 = arith.constant 64 : index
    %113 = vector.load %arg13[%c0_48, %c64] : memref<16x128xf32, #tpu.memory_space<vmem>>, vector<16x16xf32>
    tpu.vector_store %arg13[%c0_48, %c64], %112 {strides = array<i32>} : memref<16x128xf32, #tpu.memory_space<vmem>>, vector<16x16xf32>,
    %114 = vector.extract_strided_slice %14 {offsets = [0, 80], sizes = [16, 16], strides = [1, 1]} : vector<16x128xbf16> to vector<16x16xbf16>
    %115 = vector.extract_strided_slice %21 {offsets = [0, 80], sizes = [8, 16], strides = [1, 1]} : vector<8x128xbf16> to vector<8x16xbf16>
    %116 = vector.extract_strided_slice %28 {offsets = [0, 80], sizes = [8, 16], strides = [1, 1]} : vector<8x128xbf16> to vector<8x16xbf16>
    %cst_49 = arith.constant dense<0.000000e+00> : vector<16x8xf32>
    %117 = tpu.matmul %114, %115, %cst_49 {dimension_numbers = #tpu.dot_dimension_numbers<[1], [1], [0], [0], [0, 0, 1, 0], [], []>} : vector<16x16xbf16>, vector<8x16xbf16>, vector<16x8xf32> -> vector<16x8xf32>
    %cst_50 = arith.constant dense<0xFF800000> : vector<16xf32>
    %118 = vector.multi_reduction <maximumf>, %117, %cst_50 [1] : vector<16x8xf32> to vector<16xf32>
    %119 = vector.shape_cast %118 : vector<16xf32> to vector<16x1xf32>
    %120 = vector.broadcast %119 : vector<16x1xf32> to vector<16x8xf32>
    %121 = arith.subf %117, %120 : vector<16x8xf32>
    %122 = math.exp %121 : vector<16x8xf32>
    %cst_51 = arith.constant dense<0.000000e+00> : vector<16xf32>
    %123 = vector.multi_reduction <add>, %122, %cst_51 [1] : vector<16x8xf32> to vector<16xf32>
    %124 = vector.shape_cast %123 : vector<16xf32> to vector<16x1xf32>
    %125 = tpu.reciprocal %124 {approx = true} : vector<16x1xf32> -> vector<16x1xf32>
    %126 = vector.broadcast %125 : vector<16x1xf32> to vector<16x8xf32>
    %127 = arith.mulf %122, %126 : vector<16x8xf32>
    %128 = arith.truncf %127 : vector<16x8xf32> to vector<16x8xbf16>
    %cst_52 = arith.constant dense<0.000000e+00> : vector<16x16xf32>
    %129 = tpu.matmul %128, %116, %cst_52 {dimension_numbers = #tpu.dot_dimension_numbers<[1], [0], [0], [1], [0, 0, 1, 1], [], []>} : vector<16x8xbf16>, vector<8x16xbf16>, vector<16x16xf32> -> vector<16x16xf32>
    %c0_53 = arith.constant 0 : index
    %c80 = arith.constant 80 : index
    %130 = vector.load %arg13[%c0_53, %c80] : memref<16x128xf32, #tpu.memory_space<vmem>>, vector<16x16xf32>
    tpu.vector_store %arg13[%c0_53, %c80], %129 {strides = array<i32>} : memref<16x128xf32, #tpu.memory_space<vmem>>, vector<16x16xf32>,
    %131 = vector.extract_strided_slice %14 {offsets = [0, 96], sizes = [16, 16], strides = [1, 1]} : vector<16x128xbf16> to vector<16x16xbf16>
    %132 = vector.extract_strided_slice %21 {offsets = [0, 96], sizes = [8, 16], strides = [1, 1]} : vector<8x128xbf16> to vector<8x16xbf16>
    %133 = vector.extract_strided_slice %28 {offsets = [0, 96], sizes = [8, 16], strides = [1, 1]} : vector<8x128xbf16> to vector<8x16xbf16>
    %cst_54 = arith.constant dense<0.000000e+00> : vector<16x8xf32>
    %134 = tpu.matmul %131, %132, %cst_54 {dimension_numbers = #tpu.dot_dimension_numbers<[1], [1], [0], [0], [0, 0, 1, 0], [], []>} : vector<16x16xbf16>, vector<8x16xbf16>, vector<16x8xf32> -> vector<16x8xf32>
    %cst_55 = arith.constant dense<0xFF800000> : vector<16xf32>
    %135 = vector.multi_reduction <maximumf>, %134, %cst_55 [1] : vector<16x8xf32> to vector<16xf32>
    %136 = vector.shape_cast %135 : vector<16xf32> to vector<16x1xf32>
    %137 = vector.broadcast %136 : vector<16x1xf32> to vector<16x8xf32>
    %138 = arith.subf %134, %137 : vector<16x8xf32>
    %139 = math.exp %138 : vector<16x8xf32>
    %cst_56 = arith.constant dense<0.000000e+00> : vector<16xf32>
    %140 = vector.multi_reduction <add>, %139, %cst_56 [1] : vector<16x8xf32> to vector<16xf32>
    %141 = vector.shape_cast %140 : vector<16xf32> to vector<16x1xf32>
    %142 = tpu.reciprocal %141 {approx = true} : vector<16x1xf32> -> vector<16x1xf32>
    %143 = vector.broadcast %142 : vector<16x1xf32> to vector<16x8xf32>
    %144 = arith.mulf %139, %143 : vector<16x8xf32>
    %145 = arith.truncf %144 : vector<16x8xf32> to vector<16x8xbf16>
    %cst_57 = arith.constant dense<0.000000e+00> : vector<16x16xf32>
    %146 = tpu.matmul %145, %133, %cst_57 {dimension_numbers = #tpu.dot_dimension_numbers<[1], [0], [0], [1], [0, 0, 1, 1], [], []>} : vector<16x8xbf16>, vector<8x16xbf16>, vector<16x16xf32> -> vector<16x16xf32>
    %c0_58 = arith.constant 0 : index
    %c96 = arith.constant 96 : index
    %147 = vector.load %arg13[%c0_58, %c96] : memref<16x128xf32, #tpu.memory_space<vmem>>, vector<16x16xf32>
    tpu.vector_store %arg13[%c0_58, %c96], %146 {strides = array<i32>} : memref<16x128xf32, #tpu.memory_space<vmem>>, vector<16x16xf32>,
    %148 = vector.extract_strided_slice %14 {offsets = [0, 112], sizes = [16, 16], strides = [1, 1]} : vector<16x128xbf16> to vector<16x16xbf16>
    %149 = vector.extract_strided_slice %21 {offsets = [0, 112], sizes = [8, 16], strides = [1, 1]} : vector<8x128xbf16> to vector<8x16xbf16>
    %150 = vector.extract_strided_slice %28 {offsets = [0, 112], sizes = [8, 16], strides = [1, 1]} : vector<8x128xbf16> to vector<8x16xbf16>
    %cst_59 = arith.constant dense<0.000000e+00> : vector<16x8xf32>
    %151 = tpu.matmul %148, %149, %cst_59 {dimension_numbers = #tpu.dot_dimension_numbers<[1], [1], [0], [0], [0, 0, 1, 0], [], []>} : vector<16x16xbf16>, vector<8x16xbf16>, vector<16x8xf32> -> vector<16x8xf32>
    %cst_60 = arith.constant dense<0xFF800000> : vector<16xf32>
    %152 = vector.multi_reduction <maximumf>, %151, %cst_60 [1] : vector<16x8xf32> to vector<16xf32>
    %153 = vector.shape_cast %152 : vector<16xf32> to vector<16x1xf32>
    %154 = vector.broadcast %153 : vector<16x1xf32> to vector<16x8xf32>
    %155 = arith.subf %151, %154 : vector<16x8xf32>
    %156 = math.exp %155 : vector<16x8xf32>
    %cst_61 = arith.constant dense<0.000000e+00> : vector<16xf32>
    %157 = vector.multi_reduction <add>, %156, %cst_61 [1] : vector<16x8xf32> to vector<16xf32>
    %158 = vector.shape_cast %157 : vector<16xf32> to vector<16x1xf32>
    %159 = tpu.reciprocal %158 {approx = true} : vector<16x1xf32> -> vector<16x1xf32>
    %160 = vector.broadcast %159 : vector<16x1xf32> to vector<16x8xf32>
    %161 = arith.mulf %156, %160 : vector<16x8xf32>
    %162 = arith.truncf %161 : vector<16x8xf32> to vector<16x8xbf16>
    %cst_62 = arith.constant dense<0.000000e+00> : vector<16x16xf32>
    %163 = tpu.matmul %162, %150, %cst_62 {dimension_numbers = #tpu.dot_dimension_numbers<[1], [0], [0], [1], [0, 0, 1, 1], [], []>} : vector<16x8xbf16>, vector<8x16xbf16>, vector<16x16xf32> -> vector<16x16xf32>
    %c0_63 = arith.constant 0 : index
    %c112 = arith.constant 112 : index
    %164 = vector.load %arg13[%c0_63, %c112] : memref<16x128xf32, #tpu.memory_space<vmem>>, vector<16x16xf32>
    tpu.vector_store %arg13[%c0_63, %c112], %163 {strides = array<i32>} : memref<16x128xf32, #tpu.memory_space<vmem>>, vector<16x16xf32>,
    %c0_64 = arith.constant 0 : index
    %c0_65 = arith.constant 0 : index
    %165 = vector.load %arg13[%c0_64, %c0_65] : memref<16x128xf32, #tpu.memory_space<vmem>>, vector<16x128xf32>
    %166 = arith.truncf %165 : vector<16x128xf32> to vector<16x128xbf16>
    %c0_66 = arith.constant 0 : index
    %c0_67 = arith.constant 0 : index
    %167 = vector.load %arg10[%c0_66, %c0_67] : memref<128x128xbf16, #tpu.memory_space<vmem>>, vector<128x128xbf16>
    %cst_68 = arith.constant dense<0.000000e+00> : vector<16x128xf32>
    %168 = tpu.matmul %166, %167, %cst_68 {dimension_numbers = #tpu.dot_dimension_numbers<[1], [0], [0], [1], [0, 0, 1, 1], [], []>} : vector<16x128xbf16>, vector<128x128xbf16>, vector<16x128xf32> -> vector<16x128xf32>
    %c0_69 = arith.constant 0 : index
    %c0_70 = arith.constant 0 : index
    %169 = vector.load %arg11[%c0_69, %c0_70] : memref<1x128xf32, #tpu.memory_space<vmem>>, vector<1x128xf32>
    %170 = vector.broadcast %169 : vector<1x128xf32> to vector<16x128xf32>
    %171 = arith.addf %168, %170 : vector<16x128xf32>
    %c0_71 = arith.constant 0 : index
    %c0_72 = arith.constant 0 : index
    %c0_73 = arith.constant 0 : index
    %172 = vector.load %arg12[%c0_71, %c0_72, %c0_73] : memref<1x16x128xf32, #tpu.memory_space<vmem>>, vector<1x16x128xf32>
    %173 = vector.shape_cast %172 : vector<1x16x128xf32> to vector<16x128xf32>
    %174 = vector.shape_cast %171 : vector<16x128xf32> to vector<1x16x128xf32>
    tpu.vector_store %arg12[%c0_71, %c0_72, %c0_73], %174 {strides = array<i32>} : memref<1x16x128xf32, #tpu.memory_space<vmem>>, vector<1x16x128xf32>,
    return
  }
  func.func @transform_0(%arg0: i32) -> (i32, i32, i32) {
    %c0_i32 = arith.constant 0 : i32
    %c0_i32_0 = arith.constant 0 : i32
    %c0_i32_1 = arith.constant 0 : i32
    return %arg0, %c0_i32, %c0_i32_0 : i32, i32, i32
  }
  func.func @transform_1(%arg0: i32) -> (i32, i32, i32) {
    %c0_i32 = arith.constant 0 : i32
    %c0_i32_0 = arith.constant 0 : i32
    %c0_i32_1 = arith.constant 0 : i32
    return %arg0, %c0_i32, %c0_i32_0 : i32, i32, i32
  }
  func.func @transform_2(%arg0: i32) -> (i32, i32, i32) {
    %c0_i32 = arith.constant 0 : i32
    %c0_i32_0 = arith.constant 0 : i32
    %c0_i32_1 = arith.constant 0 : i32
    return %arg0, %c0_i32, %c0_i32_0 : i32, i32, i32
  }
  func.func @transform_3(%arg0: i32) -> (i32, i32) {
    %c0_i32 = arith.constant 0 : i32
    %c0_i32_0 = arith.constant 0 : i32
    %c0_i32_1 = arith.constant 0 : i32
    return %c0_i32, %c0_i32_0 : i32, i32
  }
  func.func @transform_4(%arg0: i32) -> (i32, i32) {
    %c0_i32 = arith.constant 0 : i32
    %c0_i32_0 = arith.constant 0 : i32
    %c0_i32_1 = arith.constant 0 : i32
    return %c0_i32, %c0_i32_0 : i32, i32
  }
  func.func @transform_5(%arg0: i32) -> (i32, i32) {
    %c0_i32 = arith.constant 0 : i32
    %c0_i32_0 = arith.constant 0 : i32
    %c0_i32_1 = arith.constant 0 : i32
    return %c0_i32, %c0_i32_0 : i32, i32
  }
  func.func @transform_6(%arg0: i32) -> (i32, i32) {
    %c0_i32 = arith.constant 0 : i32
    %c0_i32_0 = arith.constant 0 : i32
    %c0_i32_1 = arith.constant 0 : i32
    return %c0_i32, %c0_i32_0 : i32, i32
  }
  func.func @transform_7(%arg0: i32) -> (i32, i32) {
    %c0_i32 = arith.constant 0 : i32
    %c0_i32_0 = arith.constant 0 : i32
    %c0_i32_1 = arith.constant 0 : i32
    return %c0_i32, %c0_i32_0 : i32, i32
  }
  func.func @transform_8(%arg0: i32) -> (i32, i32) {
    %c0_i32 = arith.constant 0 : i32
    %c0_i32_0 = arith.constant 0 : i32
    %c0_i32_1 = arith.constant 0 : i32
    return %c0_i32, %c0_i32_0 : i32, i32
  }
  func.func @transform_9(%arg0: i32) -> (i32, i32) {
    %c0_i32 = arith.constant 0 : i32
    %c0_i32_0 = arith.constant 0 : i32
    %c0_i32_1 = arith.constant 0 : i32
    return %c0_i32, %c0_i32_0 : i32, i32
  }
  func.func @transform_10(%arg0: i32) -> (i32, i32) {
    %c0_i32 = arith.constant 0 : i32
    %c0_i32_0 = arith.constant 0 : i32
    %c0_i32_1 = arith.constant 0 : i32
    return %c0_i32, %c0_i32_0 : i32, i32
  }
  func.func @transform_11(%arg0: i32) -> (i32, i32, i32) {
    %c0_i32 = arith.constant 0 : i32
    %c0_i32_0 = arith.constant 0 : i32
    %c0_i32_1 = arith.constant 0 : i32
    return %arg0, %c0_i32, %c0_i32_0 : i32, i32, i32
  }
}

</mosaic_0001>

<llo_original>
// kernel: multi_head_attention.1
$region0: #{multi_head_attention.1}
  #allocation0 [shape = 'u32[]', space=smem, size = 0x4, offset = 0x4, fixed_abs, tag = 'smem constant byte address 0x4 - core index']
  #allocation1 [shape = 'u32[144,128]{1,0:T(1,128)}', space=vmem, size = 0x12000, scoped, tag = 'internal scratch']
  #allocation2 [shape = 'f32[16,128]{1,0:T(8,128)}', space=vmem, size = 0x2000, scoped, tag = 'scratch operand']
  %s0 = inlined_call_operand.vmem [shape: f32[2,16,128], index: 0, kind: input, shape index: {}]
  %s1 = inlined_call_operand.vmem [shape: f32[2,8,128], index: 1, kind: input, shape index: {}]
  %s2 = inlined_call_operand.vmem [shape: f32[2,8,128], index: 2, kind: input, shape index: {}]
  %s3 = inlined_call_operand.vmem [shape: bf16[128,128], index: 3, kind: input, shape index: {}]
  %s4 = inlined_call_operand.vmem [shape: f32[1,128], index: 4, kind: input, shape index: {}]
  %s5 = inlined_call_operand.vmem [shape: bf16[128,128], index: 5, kind: input, shape index: {}]
  %s6 = inlined_call_operand.vmem [shape: f32[1,128], index: 6, kind: input, shape index: {}]
  %s7 = inlined_call_operand.vmem [shape: bf16[128,128], index: 7, kind: input, shape index: {}]
  %s8 = inlined_call_operand.vmem [shape: f32[1,128], index: 8, kind: input, shape index: {}]
  %s9 = inlined_call_operand.vmem [shape: bf16[128,128], index: 9, kind: input, shape index: {}]
  %s10 = inlined_call_operand.vmem [shape: f32[1,128], index: 10, kind: input, shape index: {}]
  %s11 = inlined_call_operand.hbm [shape: f32[2,16,128], index: 11, kind: output, shape index: {}]
  %s12 = sld [smem:[#allocation0]]
  $region77: #{multi_head_attention.1} parent=0
    _
  %s14 = ssub.s32 1, %s12
  %s15 = scalar_select 0, %s14, %s12
  $region1: #{multi_head_attention.1} parent=0
    #allocation3 [shape = 'u8[16384]{0}', space=vmem, size = 0x4000, scoped, tag = 'output window, operand 0']
    #allocation4 [shape = 's32[2]{0}', space=sflag, size = 0x8, scoped, tag = 'scoped memory for multi_head_attention.1']
    %16 = vsyncpa [#allocation4], 0
    %s17 = scalar_lea.sflag [#allocation4], 1
    %18 = vsyncpa %s17, 0
    loop: start=0, step=1, limit=4
    $region2: #{multi_head_attention.1} parent=1 // loop_pre_header
      _
    $region3: #{multi_head_attention.1} parent=1 // loop_header
      %s20 = sphi 0, %s24
      %p21 = scmp.ge.s32.totalorder %s20, 4
      %s30 = sphi 0, %s32
      %s33 = sphi 0, %s30
      %s34 = sphi 0, %s33
      %s50 = sphi 0, %s34
      %s56 = sphi 0, %s58
      %s59 = sphi 0, %s56
      %s60 = sphi 0, %s59
      %s76 = sphi 0, %s60
      %s82 = sphi 0, %s84
      %s85 = sphi 0, %s82
      %s86 = sphi 0, %s85
      %s102 = sphi 0, %s86
      %s106 = sphi 0, %s106
      %s108 = sphi 0, %s106
      %s109 = sphi 0, %s108
      %s123 = sphi 0, %s109
      %s127 = sphi 0, %s127
      %s129 = sphi 0, %s127
      %s130 = sphi 0, %s129
      %s144 = sphi 0, %s130
      %s148 = sphi 0, %s148
      %s150 = sphi 0, %s148
      %s151 = sphi 0, %s150
      %s165 = sphi 0, %s151
      %s169 = sphi 0, %s169
      %s171 = sphi 0, %s169
      %s172 = sphi 0, %s171
      %s186 = sphi 0, %s172
      %s190 = sphi 0, %s190
      %s192 = sphi 0, %s190
      %s193 = sphi 0, %s192
      %s207 = sphi 0, %s193
      %s211 = sphi 0, %s211
      %s213 = sphi 0, %s211
      %s214 = sphi 0, %s213
      %s228 = sphi 0, %s214
      %s232 = sphi 0, %s232
      %s234 = sphi 0, %s232
      %s235 = sphi 0, %s234
      %s249 = sphi 0, %s235
      %s253 = sphi 0, %s253
      %s255 = sphi 0, %s253
      %s256 = sphi 0, %s255
      %s270 = sphi 0, %s256
      %s276 = sphi 0, %s278
      %s279 = sphi 0, %s276
      %s280 = sphi 0, %s279
      %s296 = sphi 0, %s280
    $region4: #{multi_head_attention.1} parent=1 // loop_header_branch
      %23 = sbr.rel (%p21) target = $region8
    $region5: #{multi_head_attention.1} parent=1 // loop_body
      %s25 = ssub.s32 %s20, 1
      %s26 = ssub.s32 %s20, 2
      %s27 = sadd.s32 %s20, 1
      %s28 = ssub.s32 %s20, %s27
      %p29 = scmp.eq.s32.totalorder %s28, 0
      %s31 = sadd.s32 %s30, 1
      %s32 = scalar_select %p29, %s30, %s31
      %p35 = pneg %p29
      %p36 = scmp.eq.s32.totalorder %s20, 1
      %p37 = por %p35, %p36
      %p38 = scmp.ne.s32.totalorder %s30, %s33
      %p39 = scmp.eq.s32.totalorder %s20, 0
      %p40 = por %p38, %p39
      %p41 = scmp.ne.s32.totalorder %s30, %s33
      %p42 = scmp.eq.s32.totalorder %s25, 1
      %p43 = por %p41, %p42
      %p44 = scmp.ne.s32.totalorder %s33, %s34
      %p45 = scmp.eq.s32.totalorder %s25, 0
      %p46 = por %p44, %p45
      %p47 = scmp.ne.s32.totalorder %s33, %s34
      %p48 = scmp.eq.s32.totalorder %s26, 1
      %p49 = por %p47, %p48
      %p51 = scmp.ne.s32.totalorder %s34, %s50
      %p52 = scmp.eq.s32.totalorder %s26, 0
      %p53 = por %p51, %p52
      %s54 = ssub.s32 %s20, %s27
      %p55 = scmp.eq.s32.totalorder %s54, 0
      %s57 = sadd.s32 %s56, 1
      %s58 = scalar_select %p55, %s56, %s57
      %p61 = pneg %p55
      %p62 = scmp.eq.s32.totalorder %s20, 1
      %p63 = por %p61, %p62
      %p64 = scmp.ne.s32.totalorder %s56, %s59
      %p65 = scmp.eq.s32.totalorder %s20, 0
      %p66 = por %p64, %p65
      %p67 = scmp.ne.s32.totalorder %s56, %s59
      %p68 = scmp.eq.s32.totalorder %s25, 1
      %p69 = por %p67, %p68
      %p70 = scmp.ne.s32.totalorder %s59, %s60
      %p71 = scmp.eq.s32.totalorder %s25, 0
      %p72 = por %p70, %p71
      %p73 = scmp.ne.s32.totalorder %s59, %s60
      %p74 = scmp.eq.s32.totalorder %s26, 1
      %p75 = por %p73, %p74
      %p77 = scmp.ne.s32.totalorder %s60, %s76
      %p78 = scmp.eq.s32.totalorder %s26, 0
      %p79 = por %p77, %p78
      %s80 = ssub.s32 %s20, %s27
      %p81 = scmp.eq.s32.totalorder %s80, 0
      %s83 = sadd.s32 %s82, 1
      %s84 = scalar_select %p81, %s82, %s83
      %p87 = pneg %p81
      %p88 = scmp.eq.s32.totalorder %s20, 1
      %p89 = por %p87, %p88
      %p90 = scmp.ne.s32.totalorder %s82, %s85
      %p91 = scmp.eq.s32.totalorder %s20, 0
      %p92 = por %p90, %p91
      %p93 = scmp.ne.s32.totalorder %s82, %s85
      %p94 = scmp.eq.s32.totalorder %s25, 1
      %p95 = por %p93, %p94
      %p96 = scmp.ne.s32.totalorder %s85, %s86
      %p97 = scmp.eq.s32.totalorder %s25, 0
      %p98 = por %p96, %p97
      %p99 = scmp.ne.s32.totalorder %s85, %s86
      %p100 = scmp.eq.s32.totalorder %s26, 1
      %p101 = por %p99, %p100
      %p103 = scmp.ne.s32.totalorder %s86, %s102
      %p104 = scmp.eq.s32.totalorder %s26, 0
      %p105 = por %p103, %p104
      %s107 = sadd.s32 %s106, 1
      %p110 = scmp.eq.s32.totalorder %s20, 1
      %p111 = scmp.ne.s32.totalorder %s106, %s108
      %p112 = scmp.eq.s32.totalorder %s20, 0
      %p113 = por %p111, %p112
      %p114 = scmp.ne.s32.totalorder %s106, %s108
      %p115 = scmp.eq.s32.totalorder %s25, 1
      %p116 = por %p114, %p115
      %p117 = scmp.ne.s32.totalorder %s108, %s109
      %p118 = scmp.eq.s32.totalorder %s25, 0
      %p119 = por %p117, %p118
      %p120 = scmp.ne.s32.totalorder %s108, %s109
      %p121 = scmp.eq.s32.totalorder %s26, 1
      %p122 = por %p120, %p121
      %p124 = scmp.ne.s32.totalorder %s109, %s123
      %p125 = scmp.eq.s32.totalorder %s26, 0
      %p126 = por %p124, %p125
      %s128 = sadd.s32 %s127, 1
      %p131 = scmp.eq.s32.totalorder %s20, 1
      %p132 = scmp.ne.s32.totalorder %s127, %s129
      %p133 = scmp.eq.s32.totalorder %s20, 0
      %p134 = por %p132, %p133
      %p135 = scmp.ne.s32.totalorder %s127, %s129
      %p136 = scmp.eq.s32.totalorder %s25, 1
      %p137 = por %p135, %p136
      %p138 = scmp.ne.s32.totalorder %s129, %s130
      %p139 = scmp.eq.s32.totalorder %s25, 0
      %p140 = por %p138, %p139
      %p141 = scmp.ne.s32.totalorder %s129, %s130
      %p142 = scmp.eq.s32.totalorder %s26, 1
      %p143 = por %p141, %p142
      %p145 = scmp.ne.s32.totalorder %s130, %s144
      %p146 = scmp.eq.s32.totalorder %s26, 0
      %p147 = por %p145, %p146
      %s149 = sadd.s32 %s148, 1
      %p152 = scmp.eq.s32.totalorder %s20, 1
      %p153 = scmp.ne.s32.totalorder %s148, %s150
      %p154 = scmp.eq.s32.totalorder %s20, 0
      %p155 = por %p153, %p154
      %p156 = scmp.ne.s32.totalorder %s148, %s150
      %p157 = scmp.eq.s32.totalorder %s25, 1
      %p158 = por %p156, %p157
      %p159 = scmp.ne.s32.totalorder %s150, %s151
      %p160 = scmp.eq.s32.totalorder %s25, 0
      %p161 = por %p159, %p160
      %p162 = scmp.ne.s32.totalorder %s150, %s151
      %p163 = scmp.eq.s32.totalorder %s26, 1
      %p164 = por %p162, %p163
      %p166 = scmp.ne.s32.totalorder %s151, %s165
      %p167 = scmp.eq.s32.totalorder %s26, 0
      %p168 = por %p166, %p167
      %s170 = sadd.s32 %s169, 1
      %p173 = scmp.eq.s32.totalorder %s20, 1
      %p174 = scmp.ne.s32.totalorder %s169, %s171
      %p175 = scmp.eq.s32.totalorder %s20, 0
      %p176 = por %p174, %p175
      %p177 = scmp.ne.s32.totalorder %s169, %s171
      %p178 = scmp.eq.s32.totalorder %s25, 1
      %p179 = por %p177, %p178
      %p180 = scmp.ne.s32.totalorder %s171, %s172
      %p181 = scmp.eq.s32.totalorder %s25, 0
      %p182 = por %p180, %p181
      %p183 = scmp.ne.s32.totalorder %s171, %s172
      %p184 = scmp.eq.s32.totalorder %s26, 1
      %p185 = por %p183, %p184
      %p187 = scmp.ne.s32.totalorder %s172, %s186
      %p188 = scmp.eq.s32.totalorder %s26, 0
      %p189 = por %p187, %p188
      %s191 = sadd.s32 %s190, 1
      %p194 = scmp.eq.s32.totalorder %s20, 1
      %p195 = scmp.ne.s32.totalorder %s190, %s192
      %p196 = scmp.eq.s32.totalorder %s20, 0
      %p197 = por %p195, %p196
      %p198 = scmp.ne.s32.totalorder %s190, %s192
      %p199 = scmp.eq.s32.totalorder %s25, 1
      %p200 = por %p198, %p199
      %p201 = scmp.ne.s32.totalorder %s192, %s193
      %p202 = scmp.eq.s32.totalorder %s25, 0
      %p203 = por %p201, %p202
      %p204 = scmp.ne.s32.totalorder %s192, %s193
      %p205 = scmp.eq.s32.totalorder %s26, 1
      %p206 = por %p204, %p205
      %p208 = scmp.ne.s32.totalorder %s193, %s207
      %p209 = scmp.eq.s32.totalorder %s26, 0
      %p210 = por %p208, %p209
      %s212 = sadd.s32 %s211, 1
      %p215 = scmp.eq.s32.totalorder %s20, 1
      %p216 = scmp.ne.s32.totalorder %s211, %s213
      %p217 = scmp.eq.s32.totalorder %s20, 0
      %p218 = por %p216, %p217
      %p219 = scmp.ne.s32.totalorder %s211, %s213
      %p220 = scmp.eq.s32.totalorder %s25, 1
      %p221 = por %p219, %p220
      %p222 = scmp.ne.s32.totalorder %s213, %s214
      %p223 = scmp.eq.s32.totalorder %s25, 0
      %p224 = por %p222, %p223
      %p225 = scmp.ne.s32.totalorder %s213, %s214
      %p226 = scmp.eq.s32.totalorder %s26, 1
      %p227 = por %p225, %p226
      %p229 = scmp.ne.s32.totalorder %s214, %s228
      %p230 = scmp.eq.s32.totalorder %s26, 0
      %p231 = por %p229, %p230
      %s233 = sadd.s32 %s232, 1
      %p236 = scmp.eq.s32.totalorder %s20, 1
      %p237 = scmp.ne.s32.totalorder %s232, %s234
      %p238 = scmp.eq.s32.totalorder %s20, 0
      %p239 = por %p237, %p238
      %p240 = scmp.ne.s32.totalorder %s232, %s234
      %p241 = scmp.eq.s32.totalorder %s25, 1
      %p242 = por %p240, %p241
      %p243 = scmp.ne.s32.totalorder %s234, %s235
      %p244 = scmp.eq.s32.totalorder %s25, 0
      %p245 = por %p243, %p244
      %p246 = scmp.ne.s32.totalorder %s234, %s235
      %p247 = scmp.eq.s32.totalorder %s26, 1
      %p248 = por %p246, %p247
      %p250 = scmp.ne.s32.totalorder %s235, %s249
      %p251 = scmp.eq.s32.totalorder %s26, 0
      %p252 = por %p250, %p251
      %s254 = sadd.s32 %s253, 1
      %p257 = scmp.eq.s32.totalorder %s20, 1
      %p258 = scmp.ne.s32.totalorder %s253, %s255
      %p259 = scmp.eq.s32.totalorder %s20, 0
      %p260 = por %p258, %p259
      %p261 = scmp.ne.s32.totalorder %s253, %s255
      %p262 = scmp.eq.s32.totalorder %s25, 1
      %p263 = por %p261, %p262
      %p264 = scmp.ne.s32.totalorder %s255, %s256
      %p265 = scmp.eq.s32.totalorder %s25, 0
      %p266 = por %p264, %p265
      %p267 = scmp.ne.s32.totalorder %s255, %s256
      %p268 = scmp.eq.s32.totalorder %s26, 1
      %p269 = por %p267, %p268
      %p271 = scmp.ne.s32.totalorder %s256, %s270
      %p272 = scmp.eq.s32.totalorder %s26, 0
      %p273 = por %p271, %p272
      %s274 = ssub.s32 %s20, %s27
      %p275 = scmp.eq.s32.totalorder %s274, 0
      %s277 = sadd.s32 %s276, 1
      %s278 = scalar_select %p275, %s276, %s277
      %p281 = pneg %p275
      %p282 = scmp.eq.s32.totalorder %s20, 1
      %p283 = por %p281, %p282
      %p284 = scmp.ne.s32.totalorder %s276, %s279
      %p285 = scmp.eq.s32.totalorder %s20, 0
      %p286 = por %p284, %p285
      %p287 = scmp.ne.s32.totalorder %s276, %s279
      %p288 = scmp.eq.s32.totalorder %s25, 1
      %p289 = por %p287, %p288
      %p290 = scmp.ne.s32.totalorder %s279, %s280
      %p291 = scmp.eq.s32.totalorder %s25, 0
      %p292 = por %p290, %p291
      %p293 = scmp.ne.s32.totalorder %s279, %s280
      %p294 = scmp.eq.s32.totalorder %s26, 1
      %p295 = por %p293, %p294
      %p297 = scmp.ne.s32.totalorder %s280, %s296
      %p298 = scmp.eq.s32.totalorder %s26, 0
      %p299 = por %p297, %p298
      %p300 = scmp.le.s32.totalorder 1, %s20
      %p301 = scmp.lt.s32.totalorder %s20, 3
      %p302 = pnand %p300, %p301
      %p303 = pneg %p302
      // Predicated region
      $region9: #{multi_head_attention.1} parent=5 // pred_check
        _
      $region10: #{multi_head_attention.1} parent=5 // pred_check_branch
        %305 = sbr.rel (%p302) target = $region12
      $region11: #{multi_head_attention.1} parent=5 // pred_region
        %s306 = ssub.s32 %s20, 1
        // Predicated region
        $region13: #{multi_head_attention.1} parent=11 // pred_check
          %p307 = pneg %p119
        $region14: #{multi_head_attention.1} parent=11 // pred_check_branch
          %309 = sbr.rel (%p307) target = $region16
        $region15: #{multi_head_attention.1} parent=11 // pred_region
          _
        $region16: #{multi_head_attention.1} parent=11 // pred_fallthru
          _
        // Predicated region
        $region17: #{multi_head_attention.1} parent=11 // pred_check
          %p310 = pneg %p140
        $region18: #{multi_head_attention.1} parent=11 // pred_check_branch
          %312 = sbr.rel (%p310) target = $region20
        $region19: #{multi_head_attention.1} parent=11 // pred_region
          _
        $region20: #{multi_head_attention.1} parent=11 // pred_fallthru
          _
        // Predicated region
        $region21: #{multi_head_attention.1} parent=11 // pred_check
          %p313 = pneg %p161
        $region22: #{multi_head_attention.1} parent=11 // pred_check_branch
          %315 = sbr.rel (%p313) target = $region24
        $region23: #{multi_head_attention.1} parent=11 // pred_region
          _
        $region24: #{multi_head_attention.1} parent=11 // pred_fallthru
          _
        // Predicated region
        $region25: #{multi_head_attention.1} parent=11 // pred_check
          %p316 = pneg %p182
        $region26: #{multi_head_attention.1} parent=11 // pred_check_branch
          %318 = sbr.rel (%p316) target = $region28
        $region27: #{multi_head_attention.1} parent=11 // pred_region
          _
        $region28: #{multi_head_attention.1} parent=11 // pred_fallthru
          _
        // Predicated region
        $region29: #{multi_head_attention.1} parent=11 // pred_check
          %p319 = pneg %p203
        $region30: #{multi_head_attention.1} parent=11 // pred_check_branch
          %321 = sbr.rel (%p319) target = $region32
        $region31: #{multi_head_attention.1} parent=11 // pred_region
          _
        $region32: #{multi_head_attention.1} parent=11 // pred_fallthru
          _
        // Predicated region
        $region33: #{multi_head_attention.1} parent=11 // pred_check
          %p322 = pneg %p224
        $region34: #{multi_head_attention.1} parent=11 // pred_check_branch
          %324 = sbr.rel (%p322) target = $region36
        $region35: #{multi_head_attention.1} parent=11 // pred_region
          _
        $region36: #{multi_head_attention.1} parent=11 // pred_fallthru
          _
        // Predicated region
        $region37: #{multi_head_attention.1} parent=11 // pred_check
          %p325 = pneg %p245
        $region38: #{multi_head_attention.1} parent=11 // pred_check_branch
          %327 = sbr.rel (%p325) target = $region40
        $region39: #{multi_head_attention.1} parent=11 // pred_region
          _
        $region40: #{multi_head_attention.1} parent=11 // pred_fallthru
          _
        // Predicated region
        $region41: #{multi_head_attention.1} parent=11 // pred_check
          %p328 = pneg %p266
        $region42: #{multi_head_attention.1} parent=11 // pred_check_branch
          %330 = sbr.rel (%p328) target = $region44
        $region43: #{multi_head_attention.1} parent=11 // pred_region
          _
        $region44: #{multi_head_attention.1} parent=11 // pred_fallthru
          _
      $region12: #{multi_head_attention.1} parent=5 // pred_fallthru
        _
      %p331 = scmp.lt.s32.totalorder %s20, 2
      // Predicated region
      $region45: #{multi_head_attention.1} parent=5 // pred_check
        %p332 = pneg %p331
      $region46: #{multi_head_attention.1} parent=5 // pred_check_branch
        %334 = sbr.rel (%p332) target = $region48
      $region47: #{multi_head_attention.1} parent=5 // pred_region
        // Predicated region
        $region49: #{multi_head_attention.1} parent=47 // pred_check
          %p335 = pneg %p40
        $region50: #{multi_head_attention.1} parent=47 // pred_check_branch
          %337 = sbr.rel (%p335) target = $region52
        $region51: #{multi_head_attention.1} parent=47 // pred_region
          %p338 = scmp.lt.s32.totalorder %s20, 1
          %s339 = scalar_select %p338, %s20, 1
          %s340 = smul.addr %s339, 2
          %s341 = smul.addr %s340, 8
          %s342 = scalar_lea.vmem %s0, %s341
        $region52: #{multi_head_attention.1} parent=47 // pred_fallthru
          _
        // Predicated region
        $region53: #{multi_head_attention.1} parent=47 // pred_check
          %p343 = pneg %p66
        $region54: #{multi_head_attention.1} parent=47 // pred_check_branch
          %345 = sbr.rel (%p343) target = $region56
        $region55: #{multi_head_attention.1} parent=47 // pred_region
          %p346 = scmp.lt.s32.totalorder %s20, 1
          %s347 = scalar_select %p346, %s20, 1
          %s348 = smul.addr %s347, 8
          %s349 = scalar_lea.vmem %s1, %s348
        $region56: #{multi_head_attention.1} parent=47 // pred_fallthru
          _
        // Predicated region
        $region57: #{multi_head_attention.1} parent=47 // pred_check
          %p350 = pneg %p92
        $region58: #{multi_head_attention.1} parent=47 // pred_check_branch
          %352 = sbr.rel (%p350) target = $region60
        $region59: #{multi_head_attention.1} parent=47 // pred_region
          %p353 = scmp.lt.s32.totalorder %s20, 1
          %s354 = scalar_select %p353, %s20, 1
          %s355 = smul.addr %s354, 8
          %s356 = scalar_lea.vmem %s2, %s355
        $region60: #{multi_head_attention.1} parent=47 // pred_fallthru
          _
      $region48: #{multi_head_attention.1} parent=5 // pred_fallthru
        _
      %p357 = scmp.le.s32.totalorder 1, %s20
      %p358 = scmp.lt.s32.totalorder %s20, 3
      %p359 = pnand %p357, %p358
      %p360 = pneg %p359
      // Predicated region
      $region61: #{multi_head_attention.1} parent=5 // pred_check
        _
      $region62: #{multi_head_attention.1} parent=5 // pred_check_branch
        %362 = sbr.rel (%p359) target = $region64
      $region63: #{multi_head_attention.1} parent=5 // pred_region
        %s363 = ssub.s32 %s20, 1
        %p364 = scmp.lt.s32.totalorder %s25, 1
        %s365 = scalar_select %p364, %s25, 1
        %s366 = smul.addr %s365, 2
        %s367 = smul.addr %s366, 8
        %s368 = scalar_lea.vmem %s0, %s367
        %p369 = pneg %p46
        %p370 = pneg %p43
        %p371 = scmp.lt.s32.totalorder %s25, 1
        %s372 = scalar_select %p371, %s25, 1
        %s373 = smul.addr %s372, 8
        %s374 = scalar_lea.vmem %s1, %s373
        %p375 = pneg %p72
        %p376 = pneg %p69
        %p377 = scmp.lt.s32.totalorder %s25, 1
        %s378 = scalar_select %p377, %s25, 1
        %s379 = smul.addr %s378, 8
        %s380 = scalar_lea.vmem %s2, %s379
        %p381 = pneg %p98
        %p382 = pneg %p95
        %p383 = pneg %p119
        %p384 = pneg %p116
        %p385 = pneg %p140
        %p386 = pneg %p137
        %p387 = pneg %p161
        %p388 = pneg %p158
        %p389 = pneg %p182
        %p390 = pneg %p179
        %p391 = pneg %p203
        %p392 = pneg %p200
        %p393 = pneg %p224
        %p394 = pneg %p221
        %p395 = pneg %p245
        %p396 = pneg %p242
        %p397 = pneg %p266
        %p398 = pneg %p263
        %p399 = pneg %p292
        %p400 = pneg %p289
        %s401 = sand.u32 %s279, 1
        %s402 = scalar_lea.sflag [#allocation4], %s401
        %s403 = sand.u32 %s279, 1
        %s404 = smul.addr %s403, 16
        %s405 = scalar_lea.vmem [#allocation3], %s404
        %p406 = scmp.lt.s32.totalorder %s25, 1
        %s407 = scalar_select %p406, %s25, 1
        %s408 = smul.addr %s407, 2
        %s409 = smul.addr %s408, 8
        %s410 = scalar_lea.vmem %s0, %s409
        %p411 = scmp.lt.s32.totalorder %s25, 1
        %s412 = scalar_select %p411, %s25, 1
        %s413 = smul.addr %s412, 8
        %s414 = scalar_lea.vmem %s1, %s413
        %p415 = scmp.lt.s32.totalorder %s25, 1
        %s416 = scalar_select %p415, %s25, 1
        %s417 = smul.addr %s416, 8
        %s418 = scalar_lea.vmem %s2, %s417
        %v420 = vld [vmem:[%s410] sm:$0xff]
        %v421 = vld [vmem:[%s410 + $0x8] sm:$0xff]
        %v422 = vld [vmem:[%s414] sm:$0xff]
        %v423 = vld [vmem:[%s418] sm:$0xff]
        %v424 = vpack.c.bf16 %v421, %v420
        %v425 = vld [vmem:[%s3] sm:$0xf]
        %v426 = vld [vmem:[%s3 + $0x4] sm:$0xf]
        %v427 = vld [vmem:[%s3 + $0x8] sm:$0xf]
        %v428 = vld [vmem:[%s3 + $0xc] sm:$0xf]
        %v429 = vld [vmem:[%s3 + $0x10] sm:$0xf]
        %v430 = vld [vmem:[%s3 + $0x14] sm:$0xf]
        %v431 = vld [vmem:[%s3 + $0x18] sm:$0xf]
        %v432 = vld [vmem:[%s3 + $0x1c] sm:$0xf]
        %v433 = vld [vmem:[%s3 + $0x20] sm:$0xf]
        %v434 = vld [vmem:[%s3 + $0x24] sm:$0xf]
        %v435 = vld [vmem:[%s3 + $0x28] sm:$0xf]
        %v436 = vld [vmem:[%s3 + $0x2c] sm:$0xf]
        %v437 = vld [vmem:[%s3 + $0x30] sm:$0xf]
        %v438 = vld [vmem:[%s3 + $0x34] sm:$0xf]
        %v439 = vld [vmem:[%s3 + $0x38] sm:$0xf]
        %v440 = vld [vmem:[%s3 + $0x3c] sm:$0xf]
        %v441 = vld [vmem:[%s4] sm:$0x1]
        %v443 = vlaneseq
        %v444 = vshrl.u32 %v443, 7
        %v445 = vsub.s32 0, %v444
        %v446 = vrot.slane %v441, %v445
        %v464 = vunpack.c.l.b16 %v425
        %v465 = vunpack.c.l.b16 %v426
        %v466 = vunpack.c.l.b16 %v427
        %v467 = vunpack.c.l.b16 %v428
        %v468 = vunpack.c.l.b16 %v429
        %v469 = vunpack.c.l.b16 %v430
        %v470 = vunpack.c.l.b16 %v431
        %v471 = vunpack.c.l.b16 %v432
        %v472 = vunpack.c.l.b16 %v433
        %v473 = vunpack.c.l.b16 %v434
        %v474 = vunpack.c.l.b16 %v435
        %v475 = vunpack.c.l.b16 %v436
        %v476 = vunpack.c.l.b16 %v437
        %v477 = vunpack.c.l.b16 %v438
        %v478 = vunpack.c.l.b16 %v439
        %v479 = vunpack.c.l.b16 %v440
        %v480 = vpack.c.b16 %v465, %v464
        %v481 = vpack.c.b16 %v467, %v466
        %v482 = vpack.c.b16 %v469, %v468
        %v483 = vpack.c.b16 %v471, %v470
        %v484 = vpack.c.b16 %v473, %v472
        %v485 = vpack.c.b16 %v475, %v474
        %v486 = vpack.c.b16 %v477, %v476
        %v487 = vpack.c.b16 %v479, %v478
        %496 = vmatprep.subr.bf16.mxu0 0
        %497 = vmatpush1.bf16.msra.mxu0 %v480
        %498 = vmatprep.subr.bf16.mxu0 0
        %499 = vmatpush1.bf16.msra.mxu0 %v481
        %500 = vmatprep.subr.bf16.mxu0 0
        %501 = vmatpush1.bf16.msra.mxu0 %v482
        %502 = vmatprep.subr.bf16.mxu0 0
        %503 = vmatpush1.bf16.msra.mxu0 %v483
        %504 = vmatprep.subr.bf16.mxu0 0
        %505 = vmatpush1.bf16.msra.mxu0 %v484
        %506 = vmatprep.subr.bf16.mxu0 0
        %507 = vmatpush1.bf16.msra.mxu0 %v485
        %508 = vmatprep.subr.bf16.mxu0 0
        %509 = vmatpush1.bf16.msra.mxu0 %v486
        %510 = vmatprep.subr.bf16.mxu0 0
        %511 = vmatpush1.bf16.msra.mxu0 %v487
        %512 = vmatprep.subr.bf16.mxu0 0
        %513 = vmatpush1.bf16.msra.mxu0 0
        %514 = vmatprep.subr.bf16.mxu0 0
        %515 = vmatpush1.bf16.msra.mxu0 0
        %516 = vmatprep.subr.bf16.mxu0 0
        %517 = vmatpush1.bf16.msra.mxu0 0
        %518 = vmatprep.subr.bf16.mxu0 0
        %519 = vmatpush1.bf16.msra.mxu0 0
        %520 = vmatprep.subr.bf16.mxu0 0
        %521 = vmatpush1.bf16.msra.mxu0 0
        %522 = vmatprep.subr.bf16.mxu0 0
        %523 = vmatpush1.bf16.msra.mxu0 0
        %524 = vmatprep.subr.bf16.mxu0 0
        %525 = vmatpush1.bf16.msra.mxu0 0
        %526 = vmatprep.subr.bf16.mxu0 0
        %527 = vmatpush1.bf16.msra.mxu0 0
        %528 = vmatprep.mubr.bf16.mxu0 0
        %529 = vmatmul.mubr.bf16.gmra.mrb[0].mxu0 %v424
        %v530 = vpop.f32.mrb[0].mxu0
        %v531 = vadd.f32 %v446, %v530
        %v532 = vpop.f32.mrb[0].mxu0
        %v533 = vpop.f32.mrb[0].mxu0
        %v534 = vadd.f32 %v446, %v533
        %v535 = vpop.f32.mrb[0].mxu0
        %536 = vdwg.mxu0
        %v537 = vmul.f32 %v531, 0.25
        %v538 = vmul.f32 %v534, 0.25
        %v539 = vpack.c.bf16 %v538, %v537
        %v540 = vpack.c.bf16 %v422, %v422
        %v541 = vld [vmem:[%s5] sm:$0xf]
        %v542 = vld [vmem:[%s5 + $0x4] sm:$0xf]
        %v543 = vld [vmem:[%s5 + $0x8] sm:$0xf]
        %v544 = vld [vmem:[%s5 + $0xc] sm:$0xf]
        %v545 = vld [vmem:[%s5 + $0x10] sm:$0xf]
        %v546 = vld [vmem:[%s5 + $0x14] sm:$0xf]
        %v547 = vld [vmem:[%s5 + $0x18] sm:$0xf]
        %v548 = vld [vmem:[%s5 + $0x1c] sm:$0xf]
        %v549 = vld [vmem:[%s5 + $0x20] sm:$0xf]
        %v550 = vld [vmem:[%s5 + $0x24] sm:$0xf]
        %v551 = vld [vmem:[%s5 + $0x28] sm:$0xf]
        %v552 = vld [vmem:[%s5 + $0x2c] sm:$0xf]
        %v553 = vld [vmem:[%s5 + $0x30] sm:$0xf]
        %v554 = vld [vmem:[%s5 + $0x34] sm:$0xf]
        %v555 = vld [vmem:[%s5 + $0x38] sm:$0xf]
        %v556 = vld [vmem:[%s5 + $0x3c] sm:$0xf]
        %v557 = vld [vmem:[%s6] sm:$0x1]
        %v559 = vlaneseq
        %v560 = vshrl.u32 %v559, 7
        %v561 = vsub.s32 0, %v560
        %v562 = vrot.slane %v557, %v561
        %v580 = vunpack.c.l.b16 %v541
        %v581 = vunpack.c.l.b16 %v542
        %v582 = vunpack.c.l.b16 %v543
        %v583 = vunpack.c.l.b16 %v544
        %v584 = vunpack.c.l.b16 %v545
        %v585 = vunpack.c.l.b16 %v546
        %v586 = vunpack.c.l.b16 %v547
        %v587 = vunpack.c.l.b16 %v548
        %v588 = vunpack.c.l.b16 %v549
        %v589 = vunpack.c.l.b16 %v550
        %v590 = vunpack.c.l.b16 %v551
        %v591 = vunpack.c.l.b16 %v552
        %v592 = vunpack.c.l.b16 %v553
        %v593 = vunpack.c.l.b16 %v554
        %v594 = vunpack.c.l.b16 %v555
        %v595 = vunpack.c.l.b16 %v556
        %v596 = vpack.c.b16 %v581, %v580
        %v597 = vpack.c.b16 %v583, %v582
        %v598 = vpack.c.b16 %v585, %v584
        %v599 = vpack.c.b16 %v587, %v586
        %v600 = vpack.c.b16 %v589, %v588
        %v601 = vpack.c.b16 %v591, %v590
        %v602 = vpack.c.b16 %v593, %v592
        %v603 = vpack.c.b16 %v595, %v594
        %612 = vmatprep.subr.bf16.mxu0 0
        %613 = vmatpush1.bf16.msra.mxu0 %v596
        %614 = vmatprep.subr.bf16.mxu0 0
        %615 = vmatpush1.bf16.msra.mxu0 %v597
        %616 = vmatprep.subr.bf16.mxu0 0
        %617 = vmatpush1.bf16.msra.mxu0 %v598
        %618 = vmatprep.subr.bf16.mxu0 0
        %619 = vmatpush1.bf16.msra.mxu0 %v599
        %620 = vmatprep.subr.bf16.mxu0 0
        %621 = vmatpush1.bf16.msra.mxu0 %v600
        %622 = vmatprep.subr.bf16.mxu0 0
        %623 = vmatpush1.bf16.msra.mxu0 %v601
        %624 = vmatprep.subr.bf16.mxu0 0
        %625 = vmatpush1.bf16.msra.mxu0 %v602
        %626 = vmatprep.subr.bf16.mxu0 0
        %627 = vmatpush1.bf16.msra.mxu0 %v603
        %628 = vmatprep.subr.bf16.mxu0 0
        %629 = vmatpush1.bf16.msra.mxu0 0
        %630 = vmatprep.subr.bf16.mxu0 0
        %631 = vmatpush1.bf16.msra.mxu0 0
        %632 = vmatprep.subr.bf16.mxu0 0
        %633 = vmatpush1.bf16.msra.mxu0 0
        %634 = vmatprep.subr.bf16.mxu0 0
        %635 = vmatpush1.bf16.msra.mxu0 0
        %636 = vmatprep.subr.bf16.mxu0 0
        %637 = vmatpush1.bf16.msra.mxu0 0
        %638 = vmatprep.subr.bf16.mxu0 0
        %639 = vmatpush1.bf16.msra.mxu0 0
        %640 = vmatprep.subr.bf16.mxu0 0
        %641 = vmatpush1.bf16.msra.mxu0 0
        %642 = vmatprep.subr.bf16.mxu0 0
        %643 = vmatpush1.bf16.msra.mxu0 0
        %644 = vmatprep.mubr.bf16.mxu0 0
        %645 = vmatmul.mubr.bf16.gmra.mrb[0].mxu0 %v540
        %v646 = vpop.f32.mrb[0].mxu0
        %v647 = vadd.f32 %v562, %v646
        %v648 = vpop.f32.mrb[0].mxu0
        %v649 = vpop.f32.mrb[0].mxu0
        %v650 = vpop.f32.mrb[0].mxu0
        %651 = vdwg.mxu0
        %v652 = vpack.c.bf16 %v647, %v647
        %v653 = vpack.c.bf16 %v423, %v423
        %v654 = vld [vmem:[%s7] sm:$0xf]
        %v655 = vld [vmem:[%s7 + $0x4] sm:$0xf]
        %v656 = vld [vmem:[%s7 + $0x8] sm:$0xf]
        %v657 = vld [vmem:[%s7 + $0xc] sm:$0xf]
        %v658 = vld [vmem:[%s7 + $0x10] sm:$0xf]
        %v659 = vld [vmem:[%s7 + $0x14] sm:$0xf]
        %v660 = vld [vmem:[%s7 + $0x18] sm:$0xf]
        %v661 = vld [vmem:[%s7 + $0x1c] sm:$0xf]
        %v662 = vld [vmem:[%s7 + $0x20] sm:$0xf]
        %v663 = vld [vmem:[%s7 + $0x24] sm:$0xf]
        %v664 = vld [vmem:[%s7 + $0x28] sm:$0xf]
        %v665 = vld [vmem:[%s7 + $0x2c] sm:$0xf]
        %v666 = vld [vmem:[%s7 + $0x30] sm:$0xf]
        %v667 = vld [vmem:[%s7 + $0x34] sm:$0xf]
        %v668 = vld [vmem:[%s7 + $0x38] sm:$0xf]
        %v669 = vld [vmem:[%s7 + $0x3c] sm:$0xf]
        %v670 = vld [vmem:[%s8] sm:$0x1]
        %v672 = vlaneseq
        %v673 = vshrl.u32 %v672, 7
        %v674 = vsub.s32 0, %v673
        %v675 = vrot.slane %v670, %v674
        %v693 = vunpack.c.l.b16 %v654
        %v694 = vunpack.c.l.b16 %v655
        %v695 = vunpack.c.l.b16 %v656
        %v696 = vunpack.c.l.b16 %v657
        %v697 = vunpack.c.l.b16 %v658
        %v698 = vunpack.c.l.b16 %v659
        %v699 = vunpack.c.l.b16 %v660
        %v700 = vunpack.c.l.b16 %v661
        %v701 = vunpack.c.l.b16 %v662
        %v702 = vunpack.c.l.b16 %v663
        %v703 = vunpack.c.l.b16 %v664
        %v704 = vunpack.c.l.b16 %v665
        %v705 = vunpack.c.l.b16 %v666
        %v706 = vunpack.c.l.b16 %v667
        %v707 = vunpack.c.l.b16 %v668
        %v708 = vunpack.c.l.b16 %v669
        %v709 = vpack.c.b16 %v694, %v693
        %v710 = vpack.c.b16 %v696, %v695
        %v711 = vpack.c.b16 %v698, %v697
        %v712 = vpack.c.b16 %v700, %v699
        %v713 = vpack.c.b16 %v702, %v701
        %v714 = vpack.c.b16 %v704, %v703
        %v715 = vpack.c.b16 %v706, %v705
        %v716 = vpack.c.b16 %v708, %v707
        %725 = vmatprep.subr.bf16.mxu0 0
        %726 = vmatpush1.bf16.msra.mxu0 %v709
        %727 = vmatprep.subr.bf16.mxu0 0
        %728 = vmatpush1.bf16.msra.mxu0 %v710
        %729 = vmatprep.subr.bf16.mxu0 0
        %730 = vmatpush1.bf16.msra.mxu0 %v711
        %731 = vmatprep.subr.bf16.mxu0 0
        %732 = vmatpush1.bf16.msra.mxu0 %v712
        %733 = vmatprep.subr.bf16.mxu0 0
        %734 = vmatpush1.bf16.msra.mxu0 %v713
        %735 = vmatprep.subr.bf16.mxu0 0
        %736 = vmatpush1.bf16.msra.mxu0 %v714
        %737 = vmatprep.subr.bf16.mxu0 0
        %738 = vmatpush1.bf16.msra.mxu0 %v715
        %739 = vmatprep.subr.bf16.mxu0 0
        %740 = vmatpush1.bf16.msra.mxu0 %v716
        %741 = vmatprep.subr.bf16.mxu0 0
        %742 = vmatpush1.bf16.msra.mxu0 0
        %743 = vmatprep.subr.bf16.mxu0 0
        %744 = vmatpush1.bf16.msra.mxu0 0
        %745 = vmatprep.subr.bf16.mxu0 0
        %746 = vmatpush1.bf16.msra.mxu0 0
        %747 = vmatprep.subr.bf16.mxu0 0
        %748 = vmatpush1.bf16.msra.mxu0 0
        %749 = vmatprep.subr.bf16.mxu0 0
        %750 = vmatpush1.bf16.msra.mxu0 0
        %751 = vmatprep.subr.bf16.mxu0 0
        %752 = vmatpush1.bf16.msra.mxu0 0
        %753 = vmatprep.subr.bf16.mxu0 0
        %754 = vmatpush1.bf16.msra.mxu0 0
        %755 = vmatprep.subr.bf16.mxu0 0
        %756 = vmatpush1.bf16.msra.mxu0 0
        %757 = vmatprep.mubr.bf16.mxu0 0
        %758 = vmatmul.mubr.bf16.gmra.mrb[0].mxu0 %v653
        %v759 = vpop.f32.mrb[0].mxu0
        %v760 = vadd.f32 %v675, %v759
        %v761 = vpop.f32.mrb[0].mxu0
        %v762 = vpop.f32.mrb[0].mxu0
        %v763 = vpop.f32.mrb[0].mxu0
        %764 = vdwg.mxu0
        %v765 = vpack.c.bf16 %v760, %v760
        %vm766 = vcmask 130048
        %v768 = vsel %vm766, %v539, 0
        %v771 = vsel %vm766, %v652, 0
        %773 = vmatprep.subr.bf16.mxu0 0
        %774 = vmatpush1.bf16.xpose.msra.mxu0 %v771
        %775 = vmatprep.subr.bf16.mxu0 0
        %776 = vmatpush1.bf16.xpose.msra.mxu0 0
        %777 = vmatprep.subr.bf16.mxu0 0
        %778 = vmatpush1.bf16.xpose.msra.mxu0 0
        %779 = vmatprep.subr.bf16.mxu0 0
        %780 = vmatpush1.bf16.xpose.msra.mxu0 0
        %781 = vmatprep.subr.bf16.mxu0 0
        %782 = vmatpush1.bf16.xpose.msra.mxu0 0
        %783 = vmatprep.subr.bf16.mxu0 0
        %784 = vmatpush1.bf16.xpose.msra.mxu0 0
        %785 = vmatprep.subr.bf16.mxu0 0
        %786 = vmatpush1.bf16.xpose.msra.mxu0 0
        %787 = vmatprep.subr.bf16.mxu0 0
        %788 = vmatpush1.bf16.xpose.msra.mxu0 0
        %789 = vmatprep.subr.bf16.mxu0 0
        %790 = vmatpush1.bf16.xpose.msra.mxu0 0
        %791 = vmatprep.subr.bf16.mxu0 0
        %792 = vmatpush1.bf16.xpose.msra.mxu0 0
        %793 = vmatprep.subr.bf16.mxu0 0
        %794 = vmatpush1.bf16.xpose.msra.mxu0 0
        %795 = vmatprep.subr.bf16.mxu0 0
        %796 = vmatpush1.bf16.xpose.msra.mxu0 0
        %797 = vmatprep.subr.bf16.mxu0 0
        %798 = vmatpush1.bf16.xpose.msra.mxu0 0
        %799 = vmatprep.subr.bf16.mxu0 0
        %800 = vmatpush1.bf16.xpose.msra.mxu0 0
        %801 = vmatprep.subr.bf16.mxu0 0
        %802 = vmatpush1.bf16.xpose.msra.mxu0 0
        %803 = vmatprep.subr.bf16.mxu0 0
        %804 = vmatpush1.bf16.xpose.msra.mxu0 0
        %805 = vmatprep.mubr.bf16.mxu0 0
        %806 = vmatmul.mubr.bf16.gmra.mrb[0].mxu0 %v768
        %v807 = vpop.f32.mrb[0].mxu0
        %v808 = vadd.f32 0.0, %v807
        %v809 = vpop.f32.mrb[0].mxu0
        %v810 = vpop.f32.mrb[0].mxu0
        %v811 = vadd.f32 0.0, %v810
        %v812 = vpop.f32.mrb[0].mxu0
        %813 = vdwg.mxu0
        %vm814 = vcmask 64512
        %v815 = vsel %vm814, %v808, -inf
        %816 = vmax.xlane.f32.xlu0 %v815
        %v817 = vpop.xlane.xlu0 %816
        %v818 = vsel %vm814, %v811, -inf
        %819 = vmax.xlane.f32.xlu0 %v818
        %v820 = vpop.xlane.xlu0 %819
        %v821 = vsub.f32 %v808, %v817
        %v822 = vsub.f32 %v811, %v820
        %v823 = vmul.f32 %v821, 1.442695
        %v824 = vpow.pop %v823
        %v825 = vmul.f32 %v822, 1.442695
        %v826 = vpow.pop %v825
        %v827 = vsel %vm814, %v824, 0.0
        %828 = vadd.xlane.f32.xlu0 %v827
        %v829 = vpop.xlane.xlu0 %828
        %v830 = vsel %vm814, %v826, 0.0
        %831 = vadd.xlane.f32.xlu0 %v830
        %v832 = vpop.xlane.xlu0 %831
        %v833 = vrcp.pop %v829
        %v834 = vrcp.pop %v832
        %v835 = vmul.f32 %v824, %v833
        %v836 = vmul.f32 %v826, %v834
        %v837 = vpack.c.bf16 %v836, %v835
        %v839 = vsel %vm814, %v837, 0
        %vm841 = vcmask 1043456
        %v843 = vsel %vm841, %v765, 0
        %845 = vmatprep.subr.bf16.mxu0 0
        %846 = vmatpush1.bf16.msra.mxu0 %v843
        %847 = vmatprep.subr.bf16.mxu0 0
        %848 = vmatpush1.bf16.msra.mxu0 0
        %849 = vmatprep.subr.bf16.mxu0 0
        %850 = vmatpush1.bf16.msra.mxu0 0
        %851 = vmatprep.subr.bf16.mxu0 0
        %852 = vmatpush1.bf16.msra.mxu0 0
        %853 = vmatprep.subr.bf16.mxu0 0
        %854 = vmatpush1.bf16.msra.mxu0 0
        %855 = vmatprep.subr.bf16.mxu0 0
        %856 = vmatpush1.bf16.msra.mxu0 0
        %857 = vmatprep.subr.bf16.mxu0 0
        %858 = vmatpush1.bf16.msra.mxu0 0
        %859 = vmatprep.subr.bf16.mxu0 0
        %860 = vmatpush1.bf16.msra.mxu0 0
        %861 = vmatprep.subr.bf16.mxu0 0
        %862 = vmatpush1.bf16.msra.mxu0 0
        %863 = vmatprep.subr.bf16.mxu0 0
        %864 = vmatpush1.bf16.msra.mxu0 0
        %865 = vmatprep.subr.bf16.mxu0 0
        %866 = vmatpush1.bf16.msra.mxu0 0
        %867 = vmatprep.subr.bf16.mxu0 0
        %868 = vmatpush1.bf16.msra.mxu0 0
        %869 = vmatprep.subr.bf16.mxu0 0
        %870 = vmatpush1.bf16.msra.mxu0 0
        %871 = vmatprep.subr.bf16.mxu0 0
        %872 = vmatpush1.bf16.msra.mxu0 0
        %873 = vmatprep.subr.bf16.mxu0 0
        %874 = vmatpush1.bf16.msra.mxu0 0
        %875 = vmatprep.subr.bf16.mxu0 0
        %876 = vmatpush1.bf16.msra.mxu0 0
        %877 = vmatprep.mubr.bf16.mxu0 0
        %878 = vmatmul.mubr.bf16.gmra.mrb[0].mxu0 %v839
        %v879 = vpop.f32.mrb[0].mxu0
        %v880 = vadd.f32 0.0, %v879
        %v881 = vpop.f32.mrb[0].mxu0
        %v882 = vpop.f32.mrb[0].mxu0
        %v883 = vadd.f32 0.0, %v882
        %v884 = vpop.f32.mrb[0].mxu0
        %885 = vdwg.mxu0
        %886 = vst.msk [vmem:[#allocation2] sm:$0xff] %vm766, %v880
        %887 = vst.msk [vmem:[#allocation2 + $0x8] sm:$0xff] %vm766, %v883
        %889 = vrot.lane.b32.xlu0 %v539, 112
        %v890 = vpop.permute.xlu0 %889
        %892 = vrot.lane.b32.xlu0 %v652, 112
        %v893 = vpop.permute.xlu0 %892
        %v895 = vsel %vm766, %v890, 0
        %v898 = vsel %vm766, %v893, 0
        %900 = vmatprep.subr.bf16.mxu0 0
        %901 = vmatpush1.bf16.xpose.msra.mxu0 %v898
        %902 = vmatprep.subr.bf16.mxu0 0
        %903 = vmatpush1.bf16.xpose.msra.mxu0 0
        %904 = vmatprep.subr.bf16.mxu0 0
        %905 = vmatpush1.bf16.xpose.msra.mxu0 0
        %906 = vmatprep.subr.bf16.mxu0 0
        %907 = vmatpush1.bf16.xpose.msra.mxu0 0
        %908 = vmatprep.subr.bf16.mxu0 0
        %909 = vmatpush1.bf16.xpose.msra.mxu0 0
        %910 = vmatprep.subr.bf16.mxu0 0
        %911 = vmatpush1.bf16.xpose.msra.mxu0 0
        %912 = vmatprep.subr.bf16.mxu0 0
        %913 = vmatpush1.bf16.xpose.msra.mxu0 0
        %914 = vmatprep.subr.bf16.mxu0 0
        %915 = vmatpush1.bf16.xpose.msra.mxu0 0
        %916 = vmatprep.subr.bf16.mxu0 0
        %917 = vmatpush1.bf16.xpose.msra.mxu0 0
        %918 = vmatprep.subr.bf16.mxu0 0
        %919 = vmatpush1.bf16.xpose.msra.mxu0 0
        %920 = vmatprep.subr.bf16.mxu0 0
        %921 = vmatpush1.bf16.xpose.msra.mxu0 0
        %922 = vmatprep.subr.bf16.mxu0 0
        %923 = vmatpush1.bf16.xpose.msra.mxu0 0
        %924 = vmatprep.subr.bf16.mxu0 0
        %925 = vmatpush1.bf16.xpose.msra.mxu0 0
        %926 = vmatprep.subr.bf16.mxu0 0
        %927 = vmatpush1.bf16.xpose.msra.mxu0 0
        %928 = vmatprep.subr.bf16.mxu0 0
        %929 = vmatpush1.bf16.xpose.msra.mxu0 0
        %930 = vmatprep.subr.bf16.mxu0 0
        %931 = vmatpush1.bf16.xpose.msra.mxu0 0
        %932 = vmatprep.mubr.bf16.mxu0 0
        %933 = vmatmul.mubr.bf16.gmra.mrb[0].mxu0 %v895
        %v934 = vpop.f32.mrb[0].mxu0
        %v935 = vadd.f32 0.0, %v934
        %v936 = vpop.f32.mrb[0].mxu0
        %v937 = vpop.f32.mrb[0].mxu0
        %v938 = vadd.f32 0.0, %v937
        %v939 = vpop.f32.mrb[0].mxu0
        %940 = vdwg.mxu0
        %v941 = vsel %vm814, %v935, -inf
        %942 = vmax.xlane.f32.xlu0 %v941
        %v943 = vpop.xlane.xlu0 %942
        %v944 = vsel %vm814, %v938, -inf
        %945 = vmax.xlane.f32.xlu0 %v944
        %v946 = vpop.xlane.xlu0 %945
        %v947 = vsub.f32 %v935, %v943
        %v948 = vsub.f32 %v938, %v946
        %v949 = vmul.f32 %v947, 1.442695
        %v950 = vpow.pop %v949
        %v951 = vmul.f32 %v948, 1.442695
        %v952 = vpow.pop %v951
        %v953 = vsel %vm814, %v950, 0.0
        %954 = vadd.xlane.f32.xlu0 %v953
        %v955 = vpop.xlane.xlu0 %954
        %v956 = vsel %vm814, %v952, 0.0
        %957 = vadd.xlane.f32.xlu0 %v956
        %v958 = vpop.xlane.xlu0 %957
        %v959 = vrcp.pop %v955
        %v960 = vrcp.pop %v958
        %v961 = vmul.f32 %v950, %v959
        %v962 = vmul.f32 %v952, %v960
        %v963 = vpack.c.bf16 %v962, %v961
        %965 = vrot.lane.b32.xlu0 %v765, 112
        %v966 = vpop.permute.xlu0 %965
        %v968 = vsel %vm814, %v963, 0
        %v971 = vsel %vm841, %v966, 0
        %973 = vmatprep.subr.bf16.mxu0 0
        %974 = vmatpush1.bf16.msra.mxu0 %v971
        %975 = vmatprep.subr.bf16.mxu0 0
        %976 = vmatpush1.bf16.msra.mxu0 0
        %977 = vmatprep.subr.bf16.mxu0 0
        %978 = vmatpush1.bf16.msra.mxu0 0
        %979 = vmatprep.subr.bf16.mxu0 0
        %980 = vmatpush1.bf16.msra.mxu0 0
        %981 = vmatprep.subr.bf16.mxu0 0
        %982 = vmatpush1.bf16.msra.mxu0 0
        %983 = vmatprep.subr.bf16.mxu0 0
        %984 = vmatpush1.bf16.msra.mxu0 0
        %985 = vmatprep.subr.bf16.mxu0 0
        %986 = vmatpush1.bf16.msra.mxu0 0
        %987 = vmatprep.subr.bf16.mxu0 0
        %988 = vmatpush1.bf16.msra.mxu0 0
        %989 = vmatprep.subr.bf16.mxu0 0
        %990 = vmatpush1.bf16.msra.mxu0 0
        %991 = vmatprep.subr.bf16.mxu0 0
        %992 = vmatpush1.bf16.msra.mxu0 0
        %993 = vmatprep.subr.bf16.mxu0 0
        %994 = vmatpush1.bf16.msra.mxu0 0
        %995 = vmatprep.subr.bf16.mxu0 0
        %996 = vmatpush1.bf16.msra.mxu0 0
        %997 = vmatprep.subr.bf16.mxu0 0
        %998 = vmatpush1.bf16.msra.mxu0 0
        %999 = vmatprep.subr.bf16.mxu0 0
        %1000 = vmatpush1.bf16.msra.mxu0 0
        %1001 = vmatprep.subr.bf16.mxu0 0
        %1002 = vmatpush1.bf16.msra.mxu0 0
        %1003 = vmatprep.subr.bf16.mxu0 0
        %1004 = vmatpush1.bf16.msra.mxu0 0
        %1005 = vmatprep.mubr.bf16.mxu0 0
        %1006 = vmatmul.mubr.bf16.gmra.mrb[0].mxu0 %v968
        %v1007 = vpop.f32.mrb[0].mxu0
        %v1008 = vadd.f32 0.0, %v1007
        %v1009 = vpop.f32.mrb[0].mxu0
        %v1010 = vpop.f32.mrb[0].mxu0
        %v1011 = vadd.f32 0.0, %v1010
        %v1012 = vpop.f32.mrb[0].mxu0
        %1013 = vdwg.mxu0
        %1016 = vrot.lane.b32.xlu0 %v1008, 16
        %v1017 = vpop.permute.xlu0 %1016
        %1018 = vrot.lane.b32.xlu0 %v1011, 16
        %v1019 = vpop.permute.xlu0 %1018
        %vm1022 = vcmask 261248
        %1023 = vst.msk [vmem:[#allocation2] sm:$0xff] %vm1022, %v1017
        %1024 = vst.msk [vmem:[#allocation2 + $0x8] sm:$0xff] %vm1022, %v1019
        %1025 = vrot.lane.b32.xlu0 %v539, 96
        %v1026 = vpop.permute.xlu0 %1025
        %1027 = vrot.lane.b32.xlu0 %v652, 96
        %v1028 = vpop.permute.xlu0 %1027
        %v1030 = vsel %vm766, %v1026, 0
        %v1033 = vsel %vm766, %v1028, 0
        %1035 = vmatprep.subr.bf16.mxu0 0
        %1036 = vmatpush1.bf16.xpose.msra.mxu0 %v1033
        %1037 = vmatprep.subr.bf16.mxu0 0
        %1038 = vmatpush1.bf16.xpose.msra.mxu0 0
        %1039 = vmatprep.subr.bf16.mxu0 0
        %1040 = vmatpush1.bf16.xpose.msra.mxu0 0
        %1041 = vmatprep.subr.bf16.mxu0 0
        %1042 = vmatpush1.bf16.xpose.msra.mxu0 0
        %1043 = vmatprep.subr.bf16.mxu0 0
        %1044 = vmatpush1.bf16.xpose.msra.mxu0 0
        %1045 = vmatprep.subr.bf16.mxu0 0
        %1046 = vmatpush1.bf16.xpose.msra.mxu0 0
        %1047 = vmatprep.subr.bf16.mxu0 0
        %1048 = vmatpush1.bf16.xpose.msra.mxu0 0
        %1049 = vmatprep.subr.bf16.mxu0 0
        %1050 = vmatpush1.bf16.xpose.msra.mxu0 0
        %1051 = vmatprep.subr.bf16.mxu0 0
        %1052 = vmatpush1.bf16.xpose.msra.mxu0 0
        %1053 = vmatprep.subr.bf16.mxu0 0
        %1054 = vmatpush1.bf16.xpose.msra.mxu0 0
        %1055 = vmatprep.subr.bf16.mxu0 0
        %1056 = vmatpush1.bf16.xpose.msra.mxu0 0
        %1057 = vmatprep.subr.bf16.mxu0 0
        %1058 = vmatpush1.bf16.xpose.msra.mxu0 0
        %1059 = vmatprep.subr.bf16.mxu0 0
        %1060 = vmatpush1.bf16.xpose.msra.mxu0 0
        %1061 = vmatprep.subr.bf16.mxu0 0
        %1062 = vmatpush1.bf16.xpose.msra.mxu0 0
        %1063 = vmatprep.subr.bf16.mxu0 0
        %1064 = vmatpush1.bf16.xpose.msra.mxu0 0
        %1065 = vmatprep.subr.bf16.mxu0 0
        %1066 = vmatpush1.bf16.xpose.msra.mxu0 0
        %1067 = vmatprep.mubr.bf16.mxu0 0
        %1068 = vmatmul.mubr.bf16.gmra.mrb[0].mxu0 %v1030
        %v1069 = vpop.f32.mrb[0].mxu0
        %v1070 = vadd.f32 0.0, %v1069
        %v1071 = vpop.f32.mrb[0].mxu0
        %v1072 = vpop.f32.mrb[0].mxu0
        %v1073 = vadd.f32 0.0, %v1072
        %v1074 = vpop.f32.mrb[0].mxu0
        %1075 = vdwg.mxu0
        %v1076 = vsel %vm814, %v1070, -inf
        %1077 = vmax.xlane.f32.xlu0 %v1076
        %v1078 = vpop.xlane.xlu0 %1077
        %v1079 = vsel %vm814, %v1073, -inf
        %1080 = vmax.xlane.f32.xlu0 %v1079
        %v1081 = vpop.xlane.xlu0 %1080
        %v1082 = vsub.f32 %v1070, %v1078
        %v1083 = vsub.f32 %v1073, %v1081
        %v1084 = vmul.f32 %v1082, 1.442695
        %v1085 = vpow.pop %v1084
        %v1086 = vmul.f32 %v1083, 1.442695
        %v1087 = vpow.pop %v1086
        %v1088 = vsel %vm814, %v1085, 0.0
        %1089 = vadd.xlane.f32.xlu0 %v1088
        %v1090 = vpop.xlane.xlu0 %1089
        %v1091 = vsel %vm814, %v1087, 0.0
        %1092 = vadd.xlane.f32.xlu0 %v1091
        %v1093 = vpop.xlane.xlu0 %1092
        %v1094 = vrcp.pop %v1090
        %v1095 = vrcp.pop %v1093
        %v1096 = vmul.f32 %v1085, %v1094
        %v1097 = vmul.f32 %v1087, %v1095
        %v1098 = vpack.c.bf16 %v1097, %v1096
        %1099 = vrot.lane.b32.xlu0 %v765, 96
        %v1100 = vpop.permute.xlu0 %1099
        %v1102 = vsel %vm814, %v1098, 0
        %v1105 = vsel %vm841, %v1100, 0
        %1107 = vmatprep.subr.bf16.mxu0 0
        %1108 = vmatpush1.bf16.msra.mxu0 %v1105
        %1109 = vmatprep.subr.bf16.mxu0 0
        %1110 = vmatpush1.bf16.msra.mxu0 0
        %1111 = vmatprep.subr.bf16.mxu0 0
        %1112 = vmatpush1.bf16.msra.mxu0 0
        %1113 = vmatprep.subr.bf16.mxu0 0
        %1114 = vmatpush1.bf16.msra.mxu0 0
        %1115 = vmatprep.subr.bf16.mxu0 0
        %1116 = vmatpush1.bf16.msra.mxu0 0
        %1117 = vmatprep.subr.bf16.mxu0 0
        %1118 = vmatpush1.bf16.msra.mxu0 0
        %1119 = vmatprep.subr.bf16.mxu0 0
        %1120 = vmatpush1.bf16.msra.mxu0 0
        %1121 = vmatprep.subr.bf16.mxu0 0
        %1122 = vmatpush1.bf16.msra.mxu0 0
        %1123 = vmatprep.subr.bf16.mxu0 0
        %1124 = vmatpush1.bf16.msra.mxu0 0
        %1125 = vmatprep.subr.bf16.mxu0 0
        %1126 = vmatpush1.bf16.msra.mxu0 0
        %1127 = vmatprep.subr.bf16.mxu0 0
        %1128 = vmatpush1.bf16.msra.mxu0 0
        %1129 = vmatprep.subr.bf16.mxu0 0
        %1130 = vmatpush1.bf16.msra.mxu0 0
        %1131 = vmatprep.subr.bf16.mxu0 0
        %1132 = vmatpush1.bf16.msra.mxu0 0
        %1133 = vmatprep.subr.bf16.mxu0 0
        %1134 = vmatpush1.bf16.msra.mxu0 0
        %1135 = vmatprep.subr.bf16.mxu0 0
        %1136 = vmatpush1.bf16.msra.mxu0 0
        %1137 = vmatprep.subr.bf16.mxu0 0
        %1138 = vmatpush1.bf16.msra.mxu0 0
        %1139 = vmatprep.mubr.bf16.mxu0 0
        %1140 = vmatmul.mubr.bf16.gmra.mrb[0].mxu0 %v1102
        %v1141 = vpop.f32.mrb[0].mxu0
        %v1142 = vadd.f32 0.0, %v1141
        %v1143 = vpop.f32.mrb[0].mxu0
        %v1144 = vpop.f32.mrb[0].mxu0
        %v1145 = vadd.f32 0.0, %v1144
        %v1146 = vpop.f32.mrb[0].mxu0
        %1147 = vdwg.mxu0
        %1150 = vrot.lane.b32.xlu0 %v1142, 32
        %v1151 = vpop.permute.xlu0 %1150
        %1152 = vrot.lane.b32.xlu0 %v1145, 32
        %v1153 = vpop.permute.xlu0 %1152
        %vm1156 = vcmask 392448
        %1157 = vst.msk [vmem:[#allocation2] sm:$0xff] %vm1156, %v1151
        %1158 = vst.msk [vmem:[#allocation2 + $0x8] sm:$0xff] %vm1156, %v1153
        %1159 = vrot.lane.b32.xlu0 %v539, 80
        %v1160 = vpop.permute.xlu0 %1159
        %1161 = vrot.lane.b32.xlu0 %v652, 80
        %v1162 = vpop.permute.xlu0 %1161
        %v1164 = vsel %vm766, %v1160, 0
        %v1167 = vsel %vm766, %v1162, 0
        %1169 = vmatprep.subr.bf16.mxu0 0
        %1170 = vmatpush1.bf16.xpose.msra.mxu0 %v1167
        %1171 = vmatprep.subr.bf16.mxu0 0
        %1172 = vmatpush1.bf16.xpose.msra.mxu0 0
        %1173 = vmatprep.subr.bf16.mxu0 0
        %1174 = vmatpush1.bf16.xpose.msra.mxu0 0
        %1175 = vmatprep.subr.bf16.mxu0 0
        %1176 = vmatpush1.bf16.xpose.msra.mxu0 0
        %1177 = vmatprep.subr.bf16.mxu0 0
        %1178 = vmatpush1.bf16.xpose.msra.mxu0 0
        %1179 = vmatprep.subr.bf16.mxu0 0
        %1180 = vmatpush1.bf16.xpose.msra.mxu0 0
        %1181 = vmatprep.subr.bf16.mxu0 0
        %1182 = vmatpush1.bf16.xpose.msra.mxu0 0
        %1183 = vmatprep.subr.bf16.mxu0 0
        %1184 = vmatpush1.bf16.xpose.msra.mxu0 0
        %1185 = vmatprep.subr.bf16.mxu0 0
        %1186 = vmatpush1.bf16.xpose.msra.mxu0 0
        %1187 = vmatprep.subr.bf16.mxu0 0
        %1188 = vmatpush1.bf16.xpose.msra.mxu0 0
        %1189 = vmatprep.subr.bf16.mxu0 0
        %1190 = vmatpush1.bf16.xpose.msra.mxu0 0
        %1191 = vmatprep.subr.bf16.mxu0 0
        %1192 = vmatpush1.bf16.xpose.msra.mxu0 0
        %1193 = vmatprep.subr.bf16.mxu0 0
        %1194 = vmatpush1.bf16.xpose.msra.mxu0 0
        %1195 = vmatprep.subr.bf16.mxu0 0
        %1196 = vmatpush1.bf16.xpose.msra.mxu0 0
        %1197 = vmatprep.subr.bf16.mxu0 0
        %1198 = vmatpush1.bf16.xpose.msra.mxu0 0
        %1199 = vmatprep.subr.bf16.mxu0 0
        %1200 = vmatpush1.bf16.xpose.msra.mxu0 0
        %1201 = vmatprep.mubr.bf16.mxu0 0
        %1202 = vmatmul.mubr.bf16.gmra.mrb[0].mxu0 %v1164
        %v1203 = vpop.f32.mrb[0].mxu0
        %v1204 = vadd.f32 0.0, %v1203
        %v1205 = vpop.f32.mrb[0].mxu0
        %v1206 = vpop.f32.mrb[0].mxu0
        %v1207 = vadd.f32 0.0, %v1206
        %v1208 = vpop.f32.mrb[0].mxu0
        %1209 = vdwg.mxu0
        %v1210 = vsel %vm814, %v1204, -inf
        %1211 = vmax.xlane.f32.xlu0 %v1210
        %v1212 = vpop.xlane.xlu0 %1211
        %v1213 = vsel %vm814, %v1207, -inf
        %1214 = vmax.xlane.f32.xlu0 %v1213
        %v1215 = vpop.xlane.xlu0 %1214
        %v1216 = vsub.f32 %v1204, %v1212
        %v1217 = vsub.f32 %v1207, %v1215
        %v1218 = vmul.f32 %v1216, 1.442695
        %v1219 = vpow.pop %v1218
        %v1220 = vmul.f32 %v1217, 1.442695
        %v1221 = vpow.pop %v1220
        %v1222 = vsel %vm814, %v1219, 0.0
        %1223 = vadd.xlane.f32.xlu0 %v1222
        %v1224 = vpop.xlane.xlu0 %1223
        %v1225 = vsel %vm814, %v1221, 0.0
        %1226 = vadd.xlane.f32.xlu0 %v1225
        %v1227 = vpop.xlane.xlu0 %1226
        %v1228 = vrcp.pop %v1224
        %v1229 = vrcp.pop %v1227
        %v1230 = vmul.f32 %v1219, %v1228
        %v1231 = vmul.f32 %v1221, %v1229
        %v1232 = vpack.c.bf16 %v1231, %v1230
        %1233 = vrot.lane.b32.xlu0 %v765, 80
        %v1234 = vpop.permute.xlu0 %1233
        %v1236 = vsel %vm814, %v1232, 0
        %v1239 = vsel %vm841, %v1234, 0
        %1241 = vmatprep.subr.bf16.mxu0 0
        %1242 = vmatpush1.bf16.msra.mxu0 %v1239
        %1243 = vmatprep.subr.bf16.mxu0 0
        %1244 = vmatpush1.bf16.msra.mxu0 0
        %1245 = vmatprep.subr.bf16.mxu0 0
        %1246 = vmatpush1.bf16.msra.mxu0 0
        %1247 = vmatprep.subr.bf16.mxu0 0
        %1248 = vmatpush1.bf16.msra.mxu0 0
        %1249 = vmatprep.subr.bf16.mxu0 0
        %1250 = vmatpush1.bf16.msra.mxu0 0
        %1251 = vmatprep.subr.bf16.mxu0 0
        %1252 = vmatpush1.bf16.msra.mxu0 0
        %1253 = vmatprep.subr.bf16.mxu0 0
        %1254 = vmatpush1.bf16.msra.mxu0 0
        %1255 = vmatprep.subr.bf16.mxu0 0
        %1256 = vmatpush1.bf16.msra.mxu0 0
        %1257 = vmatprep.subr.bf16.mxu0 0
        %1258 = vmatpush1.bf16.msra.mxu0 0
        %1259 = vmatprep.subr.bf16.mxu0 0
        %1260 = vmatpush1.bf16.msra.mxu0 0
        %1261 = vmatprep.subr.bf16.mxu0 0
        %1262 = vmatpush1.bf16.msra.mxu0 0
        %1263 = vmatprep.subr.bf16.mxu0 0
        %1264 = vmatpush1.bf16.msra.mxu0 0
        %1265 = vmatprep.subr.bf16.mxu0 0
        %1266 = vmatpush1.bf16.msra.mxu0 0
        %1267 = vmatprep.subr.bf16.mxu0 0
        %1268 = vmatpush1.bf16.msra.mxu0 0
        %1269 = vmatprep.subr.bf16.mxu0 0
        %1270 = vmatpush1.bf16.msra.mxu0 0
        %1271 = vmatprep.subr.bf16.mxu0 0
        %1272 = vmatpush1.bf16.msra.mxu0 0
        %1273 = vmatprep.mubr.bf16.mxu0 0
        %1274 = vmatmul.mubr.bf16.gmra.mrb[0].mxu0 %v1236
        %v1275 = vpop.f32.mrb[0].mxu0
        %v1276 = vadd.f32 0.0, %v1275
        %v1277 = vpop.f32.mrb[0].mxu0
        %v1278 = vpop.f32.mrb[0].mxu0
        %v1279 = vadd.f32 0.0, %v1278
        %v1280 = vpop.f32.mrb[0].mxu0
        %1281 = vdwg.mxu0
        %1284 = vrot.lane.b32.xlu0 %v1276, 48
        %v1285 = vpop.permute.xlu0 %1284
        %1286 = vrot.lane.b32.xlu0 %v1279, 48
        %v1287 = vpop.permute.xlu0 %1286
        %vm1290 = vcmask 523648
        %1291 = vst.msk [vmem:[#allocation2] sm:$0xff] %vm1290, %v1285
        %1292 = vst.msk [vmem:[#allocation2 + $0x8] sm:$0xff] %vm1290, %v1287
        %1293 = vrot.lane.b32.xlu0 %v539, 64
        %v1294 = vpop.permute.xlu0 %1293
        %1295 = vrot.lane.b32.xlu0 %v652, 64
        %v1296 = vpop.permute.xlu0 %1295
        %v1298 = vsel %vm766, %v1294, 0
        %v1301 = vsel %vm766, %v1296, 0
        %1303 = vmatprep.subr.bf16.mxu0 0
        %1304 = vmatpush1.bf16.xpose.msra.mxu0 %v1301
        %1305 = vmatprep.subr.bf16.mxu0 0
        %1306 = vmatpush1.bf16.xpose.msra.mxu0 0
        %1307 = vmatprep.subr.bf16.mxu0 0
        %1308 = vmatpush1.bf16.xpose.msra.mxu0 0
        %1309 = vmatprep.subr.bf16.mxu0 0
        %1310 = vmatpush1.bf16.xpose.msra.mxu0 0
        %1311 = vmatprep.subr.bf16.mxu0 0
        %1312 = vmatpush1.bf16.xpose.msra.mxu0 0
        %1313 = vmatprep.subr.bf16.mxu0 0
        %1314 = vmatpush1.bf16.xpose.msra.mxu0 0
        %1315 = vmatprep.subr.bf16.mxu0 0
        %1316 = vmatpush1.bf16.xpose.msra.mxu0 0
        %1317 = vmatprep.subr.bf16.mxu0 0
        %1318 = vmatpush1.bf16.xpose.msra.mxu0 0
        %1319 = vmatprep.subr.bf16.mxu0 0
        %1320 = vmatpush1.bf16.xpose.msra.mxu0 0
        %1321 = vmatprep.subr.bf16.mxu0 0
        %1322 = vmatpush1.bf16.xpose.msra.mxu0 0
        %1323 = vmatprep.subr.bf16.mxu0 0
        %1324 = vmatpush1.bf16.xpose.msra.mxu0 0
        %1325 = vmatprep.subr.bf16.mxu0 0
        %1326 = vmatpush1.bf16.xpose.msra.mxu0 0
        %1327 = vmatprep.subr.bf16.mxu0 0
        %1328 = vmatpush1.bf16.xpose.msra.mxu0 0
        %1329 = vmatprep.subr.bf16.mxu0 0
        %1330 = vmatpush1.bf16.xpose.msra.mxu0 0
        %1331 = vmatprep.subr.bf16.mxu0 0
        %1332 = vmatpush1.bf16.xpose.msra.mxu0 0
        %1333 = vmatprep.subr.bf16.mxu0 0
        %1334 = vmatpush1.bf16.xpose.msra.mxu0 0
        %1335 = vmatprep.mubr.bf16.mxu0 0
        %1336 = vmatmul.mubr.bf16.gmra.mrb[0].mxu0 %v1298
        %v1337 = vpop.f32.mrb[0].mxu0
        %v1338 = vadd.f32 0.0, %v1337
        %v1339 = vpop.f32.mrb[0].mxu0
        %v1340 = vpop.f32.mrb[0].mxu0
        %v1341 = vadd.f32 0.0, %v1340
        %v1342 = vpop.f32.mrb[0].mxu0
        %1343 = vdwg.mxu0
        %v1344 = vsel %vm814, %v1338, -inf
        %1345 = vmax.xlane.f32.xlu0 %v1344
        %v1346 = vpop.xlane.xlu0 %1345
        %v1347 = vsel %vm814, %v1341, -inf
        %1348 = vmax.xlane.f32.xlu0 %v1347
        %v1349 = vpop.xlane.xlu0 %1348
        %v1350 = vsub.f32 %v1338, %v1346
        %v1351 = vsub.f32 %v1341, %v1349
        %v1352 = vmul.f32 %v1350, 1.442695
        %v1353 = vpow.pop %v1352
        %v1354 = vmul.f32 %v1351, 1.442695
        %v1355 = vpow.pop %v1354
        %v1356 = vsel %vm814, %v1353, 0.0
        %1357 = vadd.xlane.f32.xlu0 %v1356
        %v1358 = vpop.xlane.xlu0 %1357
        %v1359 = vsel %vm814, %v1355, 0.0
        %1360 = vadd.xlane.f32.xlu0 %v1359
        %v1361 = vpop.xlane.xlu0 %1360
        %v1362 = vrcp.pop %v1358
        %v1363 = vrcp.pop %v1361
        %v1364 = vmul.f32 %v1353, %v1362
        %v1365 = vmul.f32 %v1355, %v1363
        %v1366 = vpack.c.bf16 %v1365, %v1364
        %1367 = vrot.lane.b32.xlu0 %v765, 64
        %v1368 = vpop.permute.xlu0 %1367
        %v1370 = vsel %vm814, %v1366, 0
        %v1373 = vsel %vm841, %v1368, 0
        %1375 = vmatprep.subr.bf16.mxu0 0
        %1376 = vmatpush1.bf16.msra.mxu0 %v1373
        %1377 = vmatprep.subr.bf16.mxu0 0
        %1378 = vmatpush1.bf16.msra.mxu0 0
        %1379 = vmatprep.subr.bf16.mxu0 0
        %1380 = vmatpush1.bf16.msra.mxu0 0
        %1381 = vmatprep.subr.bf16.mxu0 0
        %1382 = vmatpush1.bf16.msra.mxu0 0
        %1383 = vmatprep.subr.bf16.mxu0 0
        %1384 = vmatpush1.bf16.msra.mxu0 0
        %1385 = vmatprep.subr.bf16.mxu0 0
        %1386 = vmatpush1.bf16.msra.mxu0 0
        %1387 = vmatprep.subr.bf16.mxu0 0
        %1388 = vmatpush1.bf16.msra.mxu0 0
        %1389 = vmatprep.subr.bf16.mxu0 0
        %1390 = vmatpush1.bf16.msra.mxu0 0
        %1391 = vmatprep.subr.bf16.mxu0 0
        %1392 = vmatpush1.bf16.msra.mxu0 0
        %1393 = vmatprep.subr.bf16.mxu0 0
        %1394 = vmatpush1.bf16.msra.mxu0 0
        %1395 = vmatprep.subr.bf16.mxu0 0
        %1396 = vmatpush1.bf16.msra.mxu0 0
        %1397 = vmatprep.subr.bf16.mxu0 0
        %1398 = vmatpush1.bf16.msra.mxu0 0
        %1399 = vmatprep.subr.bf16.mxu0 0
        %1400 = vmatpush1.bf16.msra.mxu0 0
        %1401 = vmatprep.subr.bf16.mxu0 0
        %1402 = vmatpush1.bf16.msra.mxu0 0
        %1403 = vmatprep.subr.bf16.mxu0 0
        %1404 = vmatpush1.bf16.msra.mxu0 0
        %1405 = vmatprep.subr.bf16.mxu0 0
        %1406 = vmatpush1.bf16.msra.mxu0 0
        %1407 = vmatprep.mubr.bf16.mxu0 0
        %1408 = vmatmul.mubr.bf16.gmra.mrb[0].mxu0 %v1370
        %v1409 = vpop.f32.mrb[0].mxu0
        %v1410 = vadd.f32 0.0, %v1409
        %v1411 = vpop.f32.mrb[0].mxu0
        %v1412 = vpop.f32.mrb[0].mxu0
        %v1413 = vadd.f32 0.0, %v1412
        %v1414 = vpop.f32.mrb[0].mxu0
        %1415 = vdwg.mxu0
        %1418 = vrot.lane.b32.xlu0 %v1410, 64
        %v1419 = vpop.permute.xlu0 %1418
        %1420 = vrot.lane.b32.xlu0 %v1413, 64
        %v1421 = vpop.permute.xlu0 %1420
        %vm1424 = vcmask 654848
        %1425 = vst.msk [vmem:[#allocation2] sm:$0xff] %vm1424, %v1419
        %1426 = vst.msk [vmem:[#allocation2 + $0x8] sm:$0xff] %vm1424, %v1421
        %1427 = vrot.lane.b32.xlu0 %v539, 48
        %v1428 = vpop.permute.xlu0 %1427
        %1429 = vrot.lane.b32.xlu0 %v652, 48
        %v1430 = vpop.permute.xlu0 %1429
        %v1432 = vsel %vm766, %v1428, 0
        %v1435 = vsel %vm766, %v1430, 0
        %1437 = vmatprep.subr.bf16.mxu0 0
        %1438 = vmatpush1.bf16.xpose.msra.mxu0 %v1435
        %1439 = vmatprep.subr.bf16.mxu0 0
        %1440 = vmatpush1.bf16.xpose.msra.mxu0 0
        %1441 = vmatprep.subr.bf16.mxu0 0
        %1442 = vmatpush1.bf16.xpose.msra.mxu0 0
        %1443 = vmatprep.subr.bf16.mxu0 0
        %1444 = vmatpush1.bf16.xpose.msra.mxu0 0
        %1445 = vmatprep.subr.bf16.mxu0 0
        %1446 = vmatpush1.bf16.xpose.msra.mxu0 0
        %1447 = vmatprep.subr.bf16.mxu0 0
        %1448 = vmatpush1.bf16.xpose.msra.mxu0 0
        %1449 = vmatprep.subr.bf16.mxu0 0
        %1450 = vmatpush1.bf16.xpose.msra.mxu0 0
        %1451 = vmatprep.subr.bf16.mxu0 0
        %1452 = vmatpush1.bf16.xpose.msra.mxu0 0
        %1453 = vmatprep.subr.bf16.mxu0 0
        %1454 = vmatpush1.bf16.xpose.msra.mxu0 0
        %1455 = vmatprep.subr.bf16.mxu0 0
        %1456 = vmatpush1.bf16.xpose.msra.mxu0 0
        %1457 = vmatprep.subr.bf16.mxu0 0
        %1458 = vmatpush1.bf16.xpose.msra.mxu0 0
        %1459 = vmatprep.subr.bf16.mxu0 0
        %1460 = vmatpush1.bf16.xpose.msra.mxu0 0
        %1461 = vmatprep.subr.bf16.mxu0 0
        %1462 = vmatpush1.bf16.xpose.msra.mxu0 0
        %1463 = vmatprep.subr.bf16.mxu0 0
        %1464 = vmatpush1.bf16.xpose.msra.mxu0 0
        %1465 = vmatprep.subr.bf16.mxu0 0
        %1466 = vmatpush1.bf16.xpose.msra.mxu0 0
        %1467 = vmatprep.subr.bf16.mxu0 0
        %1468 = vmatpush1.bf16.xpose.msra.mxu0 0
        %1469 = vmatprep.mubr.bf16.mxu0 0
        %1470 = vmatmul.mubr.bf16.gmra.mrb[0].mxu0 %v1432
        %v1471 = vpop.f32.mrb[0].mxu0
        %v1472 = vadd.f32 0.0, %v1471
        %v1473 = vpop.f32.mrb[0].mxu0
        %v1474 = vpop.f32.mrb[0].mxu0
        %v1475 = vadd.f32 0.0, %v1474
        %v1476 = vpop.f32.mrb[0].mxu0
        %1477 = vdwg.mxu0
        %v1478 = vsel %vm814, %v1472, -inf
        %1479 = vmax.xlane.f32.xlu0 %v1478
        %v1480 = vpop.xlane.xlu0 %1479
        %v1481 = vsel %vm814, %v1475, -inf
        %1482 = vmax.xlane.f32.xlu0 %v1481
        %v1483 = vpop.xlane.xlu0 %1482
        %v1484 = vsub.f32 %v1472, %v1480
        %v1485 = vsub.f32 %v1475, %v1483
        %v1486 = vmul.f32 %v1484, 1.442695
        %v1487 = vpow.pop %v1486
        %v1488 = vmul.f32 %v1485, 1.442695
        %v1489 = vpow.pop %v1488
        %v1490 = vsel %vm814, %v1487, 0.0
        %1491 = vadd.xlane.f32.xlu0 %v1490
        %v1492 = vpop.xlane.xlu0 %1491
        %v1493 = vsel %vm814, %v1489, 0.0
        %1494 = vadd.xlane.f32.xlu0 %v1493
        %v1495 = vpop.xlane.xlu0 %1494
        %v1496 = vrcp.pop %v1492
        %v1497 = vrcp.pop %v1495
        %v1498 = vmul.f32 %v1487, %v1496
        %v1499 = vmul.f32 %v1489, %v1497
        %v1500 = vpack.c.bf16 %v1499, %v1498
        %1501 = vrot.lane.b32.xlu0 %v765, 48
        %v1502 = vpop.permute.xlu0 %1501
        %v1504 = vsel %vm814, %v1500, 0
        %v1507 = vsel %vm841, %v1502, 0
        %1509 = vmatprep.subr.bf16.mxu0 0
        %1510 = vmatpush1.bf16.msra.mxu0 %v1507
        %1511 = vmatprep.subr.bf16.mxu0 0
        %1512 = vmatpush1.bf16.msra.mxu0 0
        %1513 = vmatprep.subr.bf16.mxu0 0
        %1514 = vmatpush1.bf16.msra.mxu0 0
        %1515 = vmatprep.subr.bf16.mxu0 0
        %1516 = vmatpush1.bf16.msra.mxu0 0
        %1517 = vmatprep.subr.bf16.mxu0 0
        %1518 = vmatpush1.bf16.msra.mxu0 0
        %1519 = vmatprep.subr.bf16.mxu0 0
        %1520 = vmatpush1.bf16.msra.mxu0 0
        %1521 = vmatprep.subr.bf16.mxu0 0
        %1522 = vmatpush1.bf16.msra.mxu0 0
        %1523 = vmatprep.subr.bf16.mxu0 0
        %1524 = vmatpush1.bf16.msra.mxu0 0
        %1525 = vmatprep.subr.bf16.mxu0 0
        %1526 = vmatpush1.bf16.msra.mxu0 0
        %1527 = vmatprep.subr.bf16.mxu0 0
        %1528 = vmatpush1.bf16.msra.mxu0 0
        %1529 = vmatprep.subr.bf16.mxu0 0
        %1530 = vmatpush1.bf16.msra.mxu0 0
        %1531 = vmatprep.subr.bf16.mxu0 0
        %1532 = vmatpush1.bf16.msra.mxu0 0
        %1533 = vmatprep.subr.bf16.mxu0 0
        %1534 = vmatpush1.bf16.msra.mxu0 0
        %1535 = vmatprep.subr.bf16.mxu0 0
        %1536 = vmatpush1.bf16.msra.mxu0 0
        %1537 = vmatprep.subr.bf16.mxu0 0
        %1538 = vmatpush1.bf16.msra.mxu0 0
        %1539 = vmatprep.subr.bf16.mxu0 0
        %1540 = vmatpush1.bf16.msra.mxu0 0
        %1541 = vmatprep.mubr.bf16.mxu0 0
        %1542 = vmatmul.mubr.bf16.gmra.mrb[0].mxu0 %v1504
        %v1543 = vpop.f32.mrb[0].mxu0
        %v1544 = vadd.f32 0.0, %v1543
        %v1545 = vpop.f32.mrb[0].mxu0
        %v1546 = vpop.f32.mrb[0].mxu0
        %v1547 = vadd.f32 0.0, %v1546
        %v1548 = vpop.f32.mrb[0].mxu0
        %1549 = vdwg.mxu0
        %1552 = vrot.lane.b32.xlu0 %v1544, 80
        %v1553 = vpop.permute.xlu0 %1552
        %1554 = vrot.lane.b32.xlu0 %v1547, 80
        %v1555 = vpop.permute.xlu0 %1554
        %vm1558 = vcmask 786048
        %1559 = vst.msk [vmem:[#allocation2] sm:$0xff] %vm1558, %v1553
        %1560 = vst.msk [vmem:[#allocation2 + $0x8] sm:$0xff] %vm1558, %v1555
        %1561 = vrot.lane.b32.xlu0 %v539, 32
        %v1562 = vpop.permute.xlu0 %1561
        %1563 = vrot.lane.b32.xlu0 %v652, 32
        %v1564 = vpop.permute.xlu0 %1563
        %v1566 = vsel %vm766, %v1562, 0
        %v1569 = vsel %vm766, %v1564, 0
        %1571 = vmatprep.subr.bf16.mxu0 0
        %1572 = vmatpush1.bf16.xpose.msra.mxu0 %v1569
        %1573 = vmatprep.subr.bf16.mxu0 0
        %1574 = vmatpush1.bf16.xpose.msra.mxu0 0
        %1575 = vmatprep.subr.bf16.mxu0 0
        %1576 = vmatpush1.bf16.xpose.msra.mxu0 0
        %1577 = vmatprep.subr.bf16.mxu0 0
        %1578 = vmatpush1.bf16.xpose.msra.mxu0 0
        %1579 = vmatprep.subr.bf16.mxu0 0
        %1580 = vmatpush1.bf16.xpose.msra.mxu0 0
        %1581 = vmatprep.subr.bf16.mxu0 0
        %1582 = vmatpush1.bf16.xpose.msra.mxu0 0
        %1583 = vmatprep.subr.bf16.mxu0 0
        %1584 = vmatpush1.bf16.xpose.msra.mxu0 0
        %1585 = vmatprep.subr.bf16.mxu0 0
        %1586 = vmatpush1.bf16.xpose.msra.mxu0 0
        %1587 = vmatprep.subr.bf16.mxu0 0
        %1588 = vmatpush1.bf16.xpose.msra.mxu0 0
        %1589 = vmatprep.subr.bf16.mxu0 0
        %1590 = vmatpush1.bf16.xpose.msra.mxu0 0
        %1591 = vmatprep.subr.bf16.mxu0 0
        %1592 = vmatpush1.bf16.xpose.msra.mxu0 0
        %1593 = vmatprep.subr.bf16.mxu0 0
        %1594 = vmatpush1.bf16.xpose.msra.mxu0 0
        %1595 = vmatprep.subr.bf16.mxu0 0
        %1596 = vmatpush1.bf16.xpose.msra.mxu0 0
        %1597 = vmatprep.subr.bf16.mxu0 0
        %1598 = vmatpush1.bf16.xpose.msra.mxu0 0
        %1599 = vmatprep.subr.bf16.mxu0 0
        %1600 = vmatpush1.bf16.xpose.msra.mxu0 0
        %1601 = vmatprep.subr.bf16.mxu0 0
        %1602 = vmatpush1.bf16.xpose.msra.mxu0 0
        %1603 = vmatprep.mubr.bf16.mxu0 0
        %1604 = vmatmul.mubr.bf16.gmra.mrb[0].mxu0 %v1566
        %v1605 = vpop.f32.mrb[0].mxu0
        %v1606 = vadd.f32 0.0, %v1605
        %v1607 = vpop.f32.mrb[0].mxu0
        %v1608 = vpop.f32.mrb[0].mxu0
        %v1609 = vadd.f32 0.0, %v1608
        %v1610 = vpop.f32.mrb[0].mxu0
        %1611 = vdwg.mxu0
        %v1612 = vsel %vm814, %v1606, -inf
        %1613 = vmax.xlane.f32.xlu0 %v1612
        %v1614 = vpop.xlane.xlu0 %1613
        %v1615 = vsel %vm814, %v1609, -inf
        %1616 = vmax.xlane.f32.xlu0 %v1615
        %v1617 = vpop.xlane.xlu0 %1616
        %v1618 = vsub.f32 %v1606, %v1614
        %v1619 = vsub.f32 %v1609, %v1617
        %v1620 = vmul.f32 %v1618, 1.442695
        %v1621 = vpow.pop %v1620
        %v1622 = vmul.f32 %v1619, 1.442695
        %v1623 = vpow.pop %v1622
        %v1624 = vsel %vm814, %v1621, 0.0
        %1625 = vadd.xlane.f32.xlu0 %v1624
        %v1626 = vpop.xlane.xlu0 %1625
        %v1627 = vsel %vm814, %v1623, 0.0
        %1628 = vadd.xlane.f32.xlu0 %v1627
        %v1629 = vpop.xlane.xlu0 %1628
        %v1630 = vrcp.pop %v1626
        %v1631 = vrcp.pop %v1629
        %v1632 = vmul.f32 %v1621, %v1630
        %v1633 = vmul.f32 %v1623, %v1631
        %v1634 = vpack.c.bf16 %v1633, %v1632
        %1635 = vrot.lane.b32.xlu0 %v765, 32
        %v1636 = vpop.permute.xlu0 %1635
        %v1638 = vsel %vm814, %v1634, 0
        %v1641 = vsel %vm841, %v1636, 0
        %1643 = vmatprep.subr.bf16.mxu0 0
        %1644 = vmatpush1.bf16.msra.mxu0 %v1641
        %1645 = vmatprep.subr.bf16.mxu0 0
        %1646 = vmatpush1.bf16.msra.mxu0 0
        %1647 = vmatprep.subr.bf16.mxu0 0
        %1648 = vmatpush1.bf16.msra.mxu0 0
        %1649 = vmatprep.subr.bf16.mxu0 0
        %1650 = vmatpush1.bf16.msra.mxu0 0
        %1651 = vmatprep.subr.bf16.mxu0 0
        %1652 = vmatpush1.bf16.msra.mxu0 0
        %1653 = vmatprep.subr.bf16.mxu0 0
        %1654 = vmatpush1.bf16.msra.mxu0 0
        %1655 = vmatprep.subr.bf16.mxu0 0
        %1656 = vmatpush1.bf16.msra.mxu0 0
        %1657 = vmatprep.subr.bf16.mxu0 0
        %1658 = vmatpush1.bf16.msra.mxu0 0
        %1659 = vmatprep.subr.bf16.mxu0 0
        %1660 = vmatpush1.bf16.msra.mxu0 0
        %1661 = vmatprep.subr.bf16.mxu0 0
        %1662 = vmatpush1.bf16.msra.mxu0 0
        %1663 = vmatprep.subr.bf16.mxu0 0
        %1664 = vmatpush1.bf16.msra.mxu0 0
        %1665 = vmatprep.subr.bf16.mxu0 0
        %1666 = vmatpush1.bf16.msra.mxu0 0
        %1667 = vmatprep.subr.bf16.mxu0 0
        %1668 = vmatpush1.bf16.msra.mxu0 0
        %1669 = vmatprep.subr.bf16.mxu0 0
        %1670 = vmatpush1.bf16.msra.mxu0 0
        %1671 = vmatprep.subr.bf16.mxu0 0
        %1672 = vmatpush1.bf16.msra.mxu0 0
        %1673 = vmatprep.subr.bf16.mxu0 0
        %1674 = vmatpush1.bf16.msra.mxu0 0
        %1675 = vmatprep.mubr.bf16.mxu0 0
        %1676 = vmatmul.mubr.bf16.gmra.mrb[0].mxu0 %v1638
        %v1677 = vpop.f32.mrb[0].mxu0
        %v1678 = vadd.f32 0.0, %v1677
        %v1679 = vpop.f32.mrb[0].mxu0
        %v1680 = vpop.f32.mrb[0].mxu0
        %v1681 = vadd.f32 0.0, %v1680
        %v1682 = vpop.f32.mrb[0].mxu0
        %1683 = vdwg.mxu0
        %1686 = vrot.lane.b32.xlu0 %v1678, 96
        %v1687 = vpop.permute.xlu0 %1686
        %1688 = vrot.lane.b32.xlu0 %v1681, 96
        %v1689 = vpop.permute.xlu0 %1688
        %vm1692 = vcmask 917248
        %1693 = vst.msk [vmem:[#allocation2] sm:$0xff] %vm1692, %v1687
        %1694 = vst.msk [vmem:[#allocation2 + $0x8] sm:$0xff] %vm1692, %v1689
        %1695 = vrot.lane.b32.xlu0 %v539, 16
        %v1696 = vpop.permute.xlu0 %1695
        %1697 = vrot.lane.b32.xlu0 %v652, 16
        %v1698 = vpop.permute.xlu0 %1697
        %v1700 = vsel %vm766, %v1696, 0
        %v1703 = vsel %vm766, %v1698, 0
        %1705 = vmatprep.subr.bf16.mxu0 0
        %1706 = vmatpush1.bf16.xpose.msra.mxu0 %v1703
        %1707 = vmatprep.subr.bf16.mxu0 0
        %1708 = vmatpush1.bf16.xpose.msra.mxu0 0
        %1709 = vmatprep.subr.bf16.mxu0 0
        %1710 = vmatpush1.bf16.xpose.msra.mxu0 0
        %1711 = vmatprep.subr.bf16.mxu0 0
        %1712 = vmatpush1.bf16.xpose.msra.mxu0 0
        %1713 = vmatprep.subr.bf16.mxu0 0
        %1714 = vmatpush1.bf16.xpose.msra.mxu0 0
        %1715 = vmatprep.subr.bf16.mxu0 0
        %1716 = vmatpush1.bf16.xpose.msra.mxu0 0
        %1717 = vmatprep.subr.bf16.mxu0 0
        %1718 = vmatpush1.bf16.xpose.msra.mxu0 0
        %1719 = vmatprep.subr.bf16.mxu0 0
        %1720 = vmatpush1.bf16.xpose.msra.mxu0 0
        %1721 = vmatprep.subr.bf16.mxu0 0
        %1722 = vmatpush1.bf16.xpose.msra.mxu0 0
        %1723 = vmatprep.subr.bf16.mxu0 0
        %1724 = vmatpush1.bf16.xpose.msra.mxu0 0
        %1725 = vmatprep.subr.bf16.mxu0 0
        %1726 = vmatpush1.bf16.xpose.msra.mxu0 0
        %1727 = vmatprep.subr.bf16.mxu0 0
        %1728 = vmatpush1.bf16.xpose.msra.mxu0 0
        %1729 = vmatprep.subr.bf16.mxu0 0
        %1730 = vmatpush1.bf16.xpose.msra.mxu0 0
        %1731 = vmatprep.subr.bf16.mxu0 0
        %1732 = vmatpush1.bf16.xpose.msra.mxu0 0
        %1733 = vmatprep.subr.bf16.mxu0 0
        %1734 = vmatpush1.bf16.xpose.msra.mxu0 0
        %1735 = vmatprep.subr.bf16.mxu0 0
        %1736 = vmatpush1.bf16.xpose.msra.mxu0 0
        %1737 = vmatprep.mubr.bf16.mxu0 0
        %1738 = vmatmul.mubr.bf16.gmra.mrb[0].mxu0 %v1700
        %v1739 = vpop.f32.mrb[0].mxu0
        %v1740 = vadd.f32 0.0, %v1739
        %v1741 = vpop.f32.mrb[0].mxu0
        %v1742 = vpop.f32.mrb[0].mxu0
        %v1743 = vadd.f32 0.0, %v1742
        %v1744 = vpop.f32.mrb[0].mxu0
        %1745 = vdwg.mxu0
        %v1746 = vsel %vm814, %v1740, -inf
        %1747 = vmax.xlane.f32.xlu0 %v1746
        %v1748 = vpop.xlane.xlu0 %1747
        %v1749 = vsel %vm814, %v1743, -inf
        %1750 = vmax.xlane.f32.xlu0 %v1749
        %v1751 = vpop.xlane.xlu0 %1750
        %v1752 = vsub.f32 %v1740, %v1748
        %v1753 = vsub.f32 %v1743, %v1751
        %v1754 = vmul.f32 %v1752, 1.442695
        %v1755 = vpow.pop %v1754
        %v1756 = vmul.f32 %v1753, 1.442695
        %v1757 = vpow.pop %v1756
        %v1758 = vsel %vm814, %v1755, 0.0
        %1759 = vadd.xlane.f32.xlu0 %v1758
        %v1760 = vpop.xlane.xlu0 %1759
        %v1761 = vsel %vm814, %v1757, 0.0
        %1762 = vadd.xlane.f32.xlu0 %v1761
        %v1763 = vpop.xlane.xlu0 %1762
        %v1764 = vrcp.pop %v1760
        %v1765 = vrcp.pop %v1763
        %v1766 = vmul.f32 %v1755, %v1764
        %v1767 = vmul.f32 %v1757, %v1765
        %v1768 = vpack.c.bf16 %v1767, %v1766
        %1769 = vrot.lane.b32.xlu0 %v765, 16
        %v1770 = vpop.permute.xlu0 %1769
        %v1772 = vsel %vm814, %v1768, 0
        %v1775 = vsel %vm841, %v1770, 0
        %1777 = vmatprep.subr.bf16.mxu0 0
        %1778 = vmatpush1.bf16.msra.mxu0 %v1775
        %1779 = vmatprep.subr.bf16.mxu0 0
        %1780 = vmatpush1.bf16.msra.mxu0 0
        %1781 = vmatprep.subr.bf16.mxu0 0
        %1782 = vmatpush1.bf16.msra.mxu0 0
        %1783 = vmatprep.subr.bf16.mxu0 0
        %1784 = vmatpush1.bf16.msra.mxu0 0
        %1785 = vmatprep.subr.bf16.mxu0 0
        %1786 = vmatpush1.bf16.msra.mxu0 0
        %1787 = vmatprep.subr.bf16.mxu0 0
        %1788 = vmatpush1.bf16.msra.mxu0 0
        %1789 = vmatprep.subr.bf16.mxu0 0
        %1790 = vmatpush1.bf16.msra.mxu0 0
        %1791 = vmatprep.subr.bf16.mxu0 0
        %1792 = vmatpush1.bf16.msra.mxu0 0
        %1793 = vmatprep.subr.bf16.mxu0 0
        %1794 = vmatpush1.bf16.msra.mxu0 0
        %1795 = vmatprep.subr.bf16.mxu0 0
        %1796 = vmatpush1.bf16.msra.mxu0 0
        %1797 = vmatprep.subr.bf16.mxu0 0
        %1798 = vmatpush1.bf16.msra.mxu0 0
        %1799 = vmatprep.subr.bf16.mxu0 0
        %1800 = vmatpush1.bf16.msra.mxu0 0
        %1801 = vmatprep.subr.bf16.mxu0 0
        %1802 = vmatpush1.bf16.msra.mxu0 0
        %1803 = vmatprep.subr.bf16.mxu0 0
        %1804 = vmatpush1.bf16.msra.mxu0 0
        %1805 = vmatprep.subr.bf16.mxu0 0
        %1806 = vmatpush1.bf16.msra.mxu0 0
        %1807 = vmatprep.subr.bf16.mxu0 0
        %1808 = vmatpush1.bf16.msra.mxu0 0
        %1809 = vmatprep.mubr.bf16.mxu0 0
        %1810 = vmatmul.mubr.bf16.gmra.mrb[0].mxu0 %v1772
        %v1811 = vpop.f32.mrb[0].mxu0
        %v1812 = vadd.f32 0.0, %v1811
        %v1813 = vpop.f32.mrb[0].mxu0
        %v1814 = vpop.f32.mrb[0].mxu0
        %v1815 = vadd.f32 0.0, %v1814
        %v1816 = vpop.f32.mrb[0].mxu0
        %1817 = vdwg.mxu0
        %1820 = vrot.lane.b32.xlu0 %v1812, 112
        %v1821 = vpop.permute.xlu0 %1820
        %1822 = vrot.lane.b32.xlu0 %v1815, 112
        %v1823 = vpop.permute.xlu0 %1822
        %vm1826 = vcmask 1048448
        %1827 = vst.msk [vmem:[#allocation2] sm:$0xff] %vm1826, %v1821
        %1828 = vst.msk [vmem:[#allocation2 + $0x8] sm:$0xff] %vm1826, %v1823
        %v1829 = vld [vmem:[#allocation2] sm:$0xff]
        %v1830 = vld [vmem:[#allocation2 + $0x8] sm:$0xff]
        %v1831 = vpack.c.bf16 %v1830, %v1829
        %v1832 = vld [vmem:[%s9] sm:$0xf]
        %v1833 = vld [vmem:[%s9 + $0x4] sm:$0xf]
        %v1834 = vld [vmem:[%s9 + $0x8] sm:$0xf]
        %v1835 = vld [vmem:[%s9 + $0xc] sm:$0xf]
        %v1836 = vld [vmem:[%s9 + $0x10] sm:$0xf]
        %v1837 = vld [vmem:[%s9 + $0x14] sm:$0xf]
        %v1838 = vld [vmem:[%s9 + $0x18] sm:$0xf]
        %v1839 = vld [vmem:[%s9 + $0x1c] sm:$0xf]
        %v1840 = vld [vmem:[%s9 + $0x20] sm:$0xf]
        %v1841 = vld [vmem:[%s9 + $0x24] sm:$0xf]
        %v1842 = vld [vmem:[%s9 + $0x28] sm:$0xf]
        %v1843 = vld [vmem:[%s9 + $0x2c] sm:$0xf]
        %v1844 = vld [vmem:[%s9 + $0x30] sm:$0xf]
        %v1845 = vld [vmem:[%s9 + $0x34] sm:$0xf]
        %v1846 = vld [vmem:[%s9 + $0x38] sm:$0xf]
        %v1847 = vld [vmem:[%s9 + $0x3c] sm:$0xf]
        %v1848 = vld [vmem:[%s10] sm:$0x1]
        %v1850 = vlaneseq
        %v1851 = vshrl.u32 %v1850, 7
        %v1852 = vsub.s32 0, %v1851
        %v1853 = vrot.slane %v1848, %v1852
        %v1871 = vunpack.c.l.b16 %v1832
        %v1872 = vunpack.c.l.b16 %v1833
        %v1873 = vunpack.c.l.b16 %v1834
        %v1874 = vunpack.c.l.b16 %v1835
        %v1875 = vunpack.c.l.b16 %v1836
        %v1876 = vunpack.c.l.b16 %v1837
        %v1877 = vunpack.c.l.b16 %v1838
        %v1878 = vunpack.c.l.b16 %v1839
        %v1879 = vunpack.c.l.b16 %v1840
        %v1880 = vunpack.c.l.b16 %v1841
        %v1881 = vunpack.c.l.b16 %v1842
        %v1882 = vunpack.c.l.b16 %v1843
        %v1883 = vunpack.c.l.b16 %v1844
        %v1884 = vunpack.c.l.b16 %v1845
        %v1885 = vunpack.c.l.b16 %v1846
        %v1886 = vunpack.c.l.b16 %v1847
        %v1887 = vpack.c.b16 %v1872, %v1871
        %v1888 = vpack.c.b16 %v1874, %v1873
        %v1889 = vpack.c.b16 %v1876, %v1875
        %v1890 = vpack.c.b16 %v1878, %v1877
        %v1891 = vpack.c.b16 %v1880, %v1879
        %v1892 = vpack.c.b16 %v1882, %v1881
        %v1893 = vpack.c.b16 %v1884, %v1883
        %v1894 = vpack.c.b16 %v1886, %v1885
        %1903 = vmatprep.subr.bf16.mxu0 0
        %1904 = vmatpush1.bf16.msra.mxu0 %v1887
        %1905 = vmatprep.subr.bf16.mxu0 0
        %1906 = vmatpush1.bf16.msra.mxu0 %v1888
        %1907 = vmatprep.subr.bf16.mxu0 0
        %1908 = vmatpush1.bf16.msra.mxu0 %v1889
        %1909 = vmatprep.subr.bf16.mxu0 0
        %1910 = vmatpush1.bf16.msra.mxu0 %v1890
        %1911 = vmatprep.subr.bf16.mxu0 0
        %1912 = vmatpush1.bf16.msra.mxu0 %v1891
        %1913 = vmatprep.subr.bf16.mxu0 0
        %1914 = vmatpush1.bf16.msra.mxu0 %v1892
        %1915 = vmatprep.subr.bf16.mxu0 0
        %1916 = vmatpush1.bf16.msra.mxu0 %v1893
        %1917 = vmatprep.subr.bf16.mxu0 0
        %1918 = vmatpush1.bf16.msra.mxu0 %v1894
        %1919 = vmatprep.subr.bf16.mxu0 0
        %1920 = vmatpush1.bf16.msra.mxu0 0
        %1921 = vmatprep.subr.bf16.mxu0 0
        %1922 = vmatpush1.bf16.msra.mxu0 0
        %1923 = vmatprep.subr.bf16.mxu0 0
        %1924 = vmatpush1.bf16.msra.mxu0 0
        %1925 = vmatprep.subr.bf16.mxu0 0
        %1926 = vmatpush1.bf16.msra.mxu0 0
        %1927 = vmatprep.subr.bf16.mxu0 0
        %1928 = vmatpush1.bf16.msra.mxu0 0
        %1929 = vmatprep.subr.bf16.mxu0 0
        %1930 = vmatpush1.bf16.msra.mxu0 0
        %1931 = vmatprep.subr.bf16.mxu0 0
        %1932 = vmatpush1.bf16.msra.mxu0 0
        %1933 = vmatprep.subr.bf16.mxu0 0
        %1934 = vmatpush1.bf16.msra.mxu0 0
        %1935 = vmatprep.mubr.bf16.mxu0 0
        %1936 = vmatmul.mubr.bf16.gmra.mrb[0].mxu0 %v1831
        %v1937 = vpop.f32.mrb[0].mxu0
        %v1938 = vadd.f32 %v1853, %v1937
        %v1939 = vpop.f32.mrb[0].mxu0
        %v1940 = vpop.f32.mrb[0].mxu0
        %v1941 = vadd.f32 %v1853, %v1940
        %v1942 = vpop.f32.mrb[0].mxu0
        %1943 = vdwg.mxu0
        %1944 = vst [vmem:[%s405] sm:$0xff] %v1938
        %1945 = vst [vmem:[%s405 + $0x8] sm:$0xff] %v1941
        %s1946 = sand.u32 %s279, 1
        %s1947 = scalar_lea.sflag [#allocation4], %s1946
        %s1948 = sand.u32 %s279, 1
        %s1949 = smul.addr %s1948, 16
        %s1950 = scalar_lea.vmem [#allocation3], %s1949
        // Predicated region
        $region65: #{multi_head_attention.1} parent=63 // pred_check
          %p1951 = pneg %p289
        $region66: #{multi_head_attention.1} parent=63 // pred_check_branch
          %1953 = sbr.rel (%p1951) target = $region68
        $region67: #{multi_head_attention.1} parent=63 // pred_region
          %s1955 = ssub.s32 256, 256
          %1956 = vsyncadd %s1947, %s1955
          %s1957 = smul.addr %s25, 2
          %s1958 = smul.addr %s1957, 128
          %s1959 = scalar_lea.hbm %s11, %s1958
          %s1960 = sshll.u32 %s1950, 4
          %s1961 = int_to_ptr.vmem [resolvable:$true] %s1960
          %1966 = dma.vmem_to_hbm [thread:$0]  %s1961, 256, %s1959, %s1947, 128, 128, 8
        $region68: #{multi_head_attention.1} parent=63 // pred_fallthru
          _
      $region64: #{multi_head_attention.1} parent=5 // pred_fallthru
        _
      %p1967 = scmp.le.s32.totalorder 2, %s20
      // Predicated region
      $region69: #{multi_head_attention.1} parent=5 // pred_check
        %p1968 = pneg %p1967
      $region70: #{multi_head_attention.1} parent=5 // pred_check_branch
        %1970 = sbr.rel (%p1968) target = $region72
      $region71: #{multi_head_attention.1} parent=5 // pred_region
        %s1971 = ssub.s32 %s20, 2
        // Predicated region
        $region73: #{multi_head_attention.1} parent=71 // pred_check
          %p1972 = pneg %p295
        $region74: #{multi_head_attention.1} parent=71 // pred_check_branch
          %1974 = sbr.rel (%p1972) target = $region76
        $region75: #{multi_head_attention.1} parent=71 // pred_region
          %s1975 = sand.u32 %s280, 1
          %s1976 = scalar_lea.sflag [#allocation4], %s1975
          %s1977 = sand.u32 %s280, 1
          %s1978 = smul.addr %s1977, 16
          %s1979 = scalar_lea.vmem [#allocation3], %s1978
          %1980 = dma.done %s1976, 256
        $region76: #{multi_head_attention.1} parent=71 // pred_fallthru
          _
      $region72: #{multi_head_attention.1} parent=5 // pred_fallthru
        _
    $region6: #{multi_head_attention.1} parent=1 // loop_footer
      %s24 = sadd.s32 1, %s20
    $region7: #{multi_head_attention.1} parent=1 // loop_footer_branch
      %19 = sbr.rel target = $region3
    $region8: #{multi_head_attention.1} parent=1 // loop_exit
      _
    %1981 = vsyncpa [#allocation4], 1
    %s1982 = scalar_lea.sflag [#allocation4], 1
    %1983 = vsyncpa %s1982, 1

</llo_original>
